<compile_context>
chip_gen: v6e
topology: v6e:2x2x1
jax: 0.10.0
libtpu: 0.0.40
codegen_flags: <defaults>
</compile_context>

<pallas_src>
import functools

import jax
import jax.numpy as jnp
from jax import lax
from jax.experimental import pallas as pl
from jax.experimental.pallas import tpu as pltpu


def mlp_kernel(x_ref, w1_ref, b1_ref, w2_ref, b2_ref, w3_ref, b3_ref, o_ref, *, tc):
    # x_ref / o_ref: (1, tile) lane-dense batch slabs.
    # Weights/biases fully resident in VMEM; b3 is a scalar in SMEM.
    w1 = w1_ref[...]        # (64, 1)
    b1 = b1_ref[...]        # (64, 1)
    w2 = w2_ref[...]        # (64, 64)
    b2 = b2_ref[...]        # (64, 1)
    w3 = w3_ref[...]        # (64, 1)  (fc3 weight column)
    b3 = b3_ref[0, 0]       # scalar

    n_chunks = x_ref.shape[1] // tc

    def body(c, carry):
        start = pl.multiple_of(c * tc, tc)
        x = x_ref[:, pl.ds(start, tc)]                       # (1, tc)

        # Layer 1 (in=1): VPU broadcast multiply-add, no MXU pass.
        h1 = jnp.maximum(w1 * x + b1, 0.0)                   # (64, tc)

        # Layer 2 (64x64): the only real matmul -> MXU.
        h2 = jnp.dot(w2, h1, preferred_element_type=jnp.float32) + b2
        h2 = jnp.maximum(h2, 0.0)                            # (64, tc)

        # Layer 3 (out=1): VPU multiply + cross-sublane reduce; result is a
        # lane-dense (1, tc) row -> unmasked store.
        y = jnp.sum(h2 * w3, axis=0, keepdims=True) + b3     # (1, tc)

        o_ref[:, pl.ds(start, tc)] = y
        return carry

    lax.fori_loop(0, n_chunks, body, 0, unroll=True)


def mlp_forward(x, params, *, tm=1024, tc=256):
    """x: (N, 1) float32. Returns (N, 1) float32."""
    w1, b1, w2, b2, w3, b3 = params
    N = x.shape[0]

    assert tc % 128 == 0 and tm % tc == 0
    assert ((tm // tc) & (tm // tc - 1)) == 0, "tm/tc must be a power of two"

    # Present the batch on the lane axis (layout plumbing only).
    xt = x.reshape(1, N)

    # Pad the batch to a multiple of the compute chunk.
    n_pad = -(-N // tc) * tc
    # Pick the DMA tile: as large as requested, but keep >= 2 grid steps when
    # possible so v7x's two TensorCores both get work.
    tile = min(tm, max(tc, n_pad))
    while tile > tc and (-(-n_pad // tile)) < 2:
        tile //= 2
    n_pad = -(-n_pad // tile) * tile
    if n_pad != N:
        xt = jnp.pad(xt, ((0, 0), (0, n_pad - N)))

    grid = (n_pad // tile,)
    kernel = functools.partial(mlp_kernel, tc=tc)

    # Weights are tiny and their index_map is constant, so they are fetched
    # once and stay resident across grid steps.
    # NOTE: deeper pipelining (pl.Buffered) on x/out and single-buffering the
    # constant weights are optional micro-tweaks; skipped here for robustness.
    const2d = lambda shape: pl.BlockSpec(shape, lambda i: (0, 0))

    out = pl.pallas_call(
        kernel,
        out_shape=jax.ShapeDtypeStruct((1, n_pad), jnp.float32),
        grid_spec=pltpu.PrefetchScalarGridSpec(
            num_scalar_prefetch=0,
            grid=grid,
            in_specs=[
                pl.BlockSpec((1, tile), lambda i: (0, i)),           # x slab
                const2d((64, 1)),                                    # w1
                const2d((64, 1)),                                    # b1
                const2d((64, 64)),                                   # w2
                const2d((64, 1)),                                    # b2
                const2d((64, 1)),                                    # w3 (column)
                pl.BlockSpec(memory_space=pltpu.MemorySpace.SMEM),   # b3 scalar
            ],
            out_specs=pl.BlockSpec((1, tile), lambda i: (0, i)),
        ),
        compiler_params=pltpu.CompilerParams(
            dimension_semantics=("parallel",)),
    )(xt, w1, b1, w2, b2, w3, b3)

    return out[0, :N].reshape(N, 1)


def init_params(key):
    """Deterministic init mirroring nn.Linear default U(-1/sqrt(fan_in), +).

    Stored in the kernel's layout: W is (out, in) except w3 which is kept as a
    (in=64, out=1) column (i.e. fc3.weight.T); biases are (out, 1); b3 is (1,1).
    """
    def linear(key, fan_in, fan_out):
        kw, kb = jax.random.split(key)
        bound = 1.0 / jnp.sqrt(jnp.float32(fan_in))
        w = jax.random.uniform(kw, (fan_out, fan_in), jnp.float32, -bound, bound)
        b = jax.random.uniform(kb, (fan_out, 1), jnp.float32, -bound, bound)
        return w, b

    k1, k2, k3 = jax.random.split(key, 3)
    w1, b1 = linear(k1, 1, 64)        # (64, 1), (64, 1)
    w2, b2 = linear(k2, 64, 64)       # (64, 64), (64, 1)
    w3t, b3 = linear(k3, 64, 1)       # (1, 64), (1, 1)
    w3 = w3t.T                        # (64, 1) column for the kernel
    return (w1, b1, w2, b2, w3, b3)


def mlp_reference(x, params):
    """Pure-JAX reference in PyTorch convention (x: (N, 1))."""
    w1, b1, w2, b2, w3, b3 = params
    h1 = jnp.maximum(x @ w1.T + b1.T, 0.0)   # (N, 64)
    h2 = jnp.maximum(h1 @ w2.T + b2.T, 0.0)  # (N, 64)
    return h2 @ w3 + b3                      # (N, 1)   (w3 is fc3.weight.T)


if __name__ == "__main__":
    key = jax.random.PRNGKey(0)
    params = init_params(key)

    # Small synthetic input consistent with the module: scalar polynomial
    # domain samples (original script uses linspace(-10, 10, 1000)).
    for N in (2048, 1000):   # exact-multiple and padded (odd-size) paths
        x = jnp.linspace(-10.0, 10.0, N, dtype=jnp.float32).reshape(N, 1)

        out = jax.block_until_ready(mlp_forward(x, params))
        ref = mlp_reference(x, params)

        assert out.shape == (N, 1)
        assert jnp.allclose(out, ref, rtol=1e-5, atol=1e-4), float(
            jnp.max(jnp.abs(out - ref)))

    print("KERNEL_OK")
</pallas_src>

<mosaic_0001>
module attributes {stable_mosaic.version = 11 : i64} {
  func.func @mlp_kernel(%arg0: i32, %arg1: memref<1x1024xf32, #tpu.memory_space<vmem>>, %arg2: memref<64x1xf32, #tpu.memory_space<vmem>>, %arg3: memref<64x1xf32, #tpu.memory_space<vmem>>, %arg4: memref<64x64xf32, #tpu.memory_space<vmem>>, %arg5: memref<64x1xf32, #tpu.memory_space<vmem>>, %arg6: memref<64x1xf32, #tpu.memory_space<vmem>>, %arg7: memref<1x1xf32, #tpu.memory_space<smem>>, %arg8: memref<1x1024xf32, #tpu.memory_space<vmem>>) attributes {dimension_semantics = [#tpu.dimension_semantics<parallel>], iteration_bounds = array<i64: 2>, scalar_prefetch = 0 : i64, scratch_operands = 0 : i64, tpu.core_type = #tpu.core_type<tc>, window_params = [{transform_indices = @transform_0, window_bounds = array<i64: 1, 1024>}, {pipeline_mode = #tpu.pipeline_mode<synchronous>, transform_indices = @transform_1, window_bounds = array<i64: 64, 1>}, {pipeline_mode = #tpu.pipeline_mode<synchronous>, transform_indices = @transform_2, window_bounds = array<i64: 64, 1>}, {pipeline_mode = #tpu.pipeline_mode<synchronous>, transform_indices = @transform_3, window_bounds = array<i64: 64, 64>}, {pipeline_mode = #tpu.pipeline_mode<synchronous>, transform_indices = @transform_4, window_bounds = array<i64: 64, 1>}, {pipeline_mode = #tpu.pipeline_mode<synchronous>, transform_indices = @transform_5, window_bounds = array<i64: 64, 1>}, {transform_indices = @transform_6, window_bounds = array<i64: 1, 1>}, {transform_indices = @transform_7, window_bounds = array<i64: 1, 1024>}]} {
    %c0 = arith.constant 0 : index
    %c0_0 = arith.constant 0 : index
    %0 = vector.load %arg2[%c0, %c0_0] : memref<64x1xf32, #tpu.memory_space<vmem>>, vector<64x1xf32>
    %c0_1 = arith.constant 0 : index
    %c0_2 = arith.constant 0 : index
    %1 = vector.load %arg3[%c0_1, %c0_2] : memref<64x1xf32, #tpu.memory_space<vmem>>, vector<64x1xf32>
    %c0_3 = arith.constant 0 : index
    %c0_4 = arith.constant 0 : index
    %2 = vector.load %arg4[%c0_3, %c0_4] : memref<64x64xf32, #tpu.memory_space<vmem>>, vector<64x64xf32>
    %c0_5 = arith.constant 0 : index
    %c0_6 = arith.constant 0 : index
    %3 = vector.load %arg5[%c0_5, %c0_6] : memref<64x1xf32, #tpu.memory_space<vmem>>, vector<64x1xf32>
    %c0_7 = arith.constant 0 : index
    %c0_8 = arith.constant 0 : index
    %4 = vector.load %arg6[%c0_7, %c0_8] : memref<64x1xf32, #tpu.memory_space<vmem>>, vector<64x1xf32>
    %c0_9 = arith.constant 0 : index
    %c0_10 = arith.constant 0 : index
    %5 = memref.load %arg7[%c0_9, %c0_10] : memref<1x1xf32, #tpu.memory_space<smem>>
    %c0_i32 = arith.constant 0 : i32
    %c256_i32 = arith.constant 256 : i32
    %6 = arith.muli %c0_i32, %c256_i32 : i32
    %7 = tpu.assume_multiple %6, 256 : i32
    %c0_11 = arith.constant 0 : index
    %8 = arith.index_cast %7 : i32 to index
    %9 = vector.load %arg1[%c0_11, %8] : memref<1x1024xf32, #tpu.memory_space<vmem>>, vector<1x256xf32>
    %10 = vector.broadcast %0 : vector<64x1xf32> to vector<64x256xf32>
    %11 = vector.broadcast %9 : vector<1x256xf32> to vector<64x256xf32>
    %12 = arith.mulf %10, %11 : vector<64x256xf32>
    %13 = vector.broadcast %1 : vector<64x1xf32> to vector<64x256xf32>
    %14 = arith.addf %12, %13 : vector<64x256xf32>
    %cst = arith.constant 0.000000e+00 : f32
    %15 = vector.broadcast %cst : f32 to vector<64x256xf32>
    %16 = arith.maximumf %14, %15 : vector<64x256xf32>
    %cst_12 = arith.constant dense<0.000000e+00> : vector<64x256xf32>
    %17 = tpu.matmul %2, %16, %cst_12 {dimension_numbers = #tpu.dot_dimension_numbers<[1], [0], [0], [1], [0, 0, 1, 1], [], []>} : vector<64x64xf32>, vector<64x256xf32>, vector<64x256xf32> -> vector<64x256xf32>
    %18 = vector.broadcast %3 : vector<64x1xf32> to vector<64x256xf32>
    %19 = arith.addf %17, %18 : vector<64x256xf32>
    %cst_13 = arith.constant 0.000000e+00 : f32
    %20 = vector.broadcast %cst_13 : f32 to vector<64x256xf32>
    %21 = arith.maximumf %19, %20 : vector<64x256xf32>
    %22 = vector.broadcast %4 : vector<64x1xf32> to vector<64x256xf32>
    %23 = arith.mulf %21, %22 : vector<64x256xf32>
    %cst_14 = arith.constant dense<0.000000e+00> : vector<256xf32>
    %24 = vector.multi_reduction <add>, %23, %cst_14 [0] : vector<64x256xf32> to vector<256xf32>
    %25 = vector.shape_cast %24 : vector<256xf32> to vector<1x256xf32>
    %26 = vector.broadcast %5 : f32 to vector<1x256xf32>
    %27 = arith.addf %25, %26 : vector<1x256xf32>
    %c0_15 = arith.constant 0 : index
    %28 = arith.index_cast %7 : i32 to index
    %29 = vector.load %arg8[%c0_15, %28] : memref<1x1024xf32, #tpu.memory_space<vmem>>, vector<1x256xf32>
    tpu.vector_store %arg8[%c0_15, %28], %27 {strides = array<i32>} : memref<1x1024xf32, #tpu.memory_space<vmem>>, vector<1x256xf32>,
    %c1_i32 = arith.constant 1 : i32
    %c256_i32_16 = arith.constant 256 : i32
    %30 = arith.muli %c1_i32, %c256_i32_16 : i32
    %31 = tpu.assume_multiple %30, 256 : i32
    %c0_17 = arith.constant 0 : index
    %32 = arith.index_cast %31 : i32 to index
    %33 = vector.load %arg1[%c0_17, %32] : memref<1x1024xf32, #tpu.memory_space<vmem>>, vector<1x256xf32>
    %34 = vector.broadcast %0 : vector<64x1xf32> to vector<64x256xf32>
    %35 = vector.broadcast %33 : vector<1x256xf32> to vector<64x256xf32>
    %36 = arith.mulf %34, %35 : vector<64x256xf32>
    %37 = vector.broadcast %1 : vector<64x1xf32> to vector<64x256xf32>
    %38 = arith.addf %36, %37 : vector<64x256xf32>
    %cst_18 = arith.constant 0.000000e+00 : f32
    %39 = vector.broadcast %cst_18 : f32 to vector<64x256xf32>
    %40 = arith.maximumf %38, %39 : vector<64x256xf32>
    %cst_19 = arith.constant dense<0.000000e+00> : vector<64x256xf32>
    %41 = tpu.matmul %2, %40, %cst_19 {dimension_numbers = #tpu.dot_dimension_numbers<[1], [0], [0], [1], [0, 0, 1, 1], [], []>} : vector<64x64xf32>, vector<64x256xf32>, vector<64x256xf32> -> vector<64x256xf32>
    %42 = vector.broadcast %3 : vector<64x1xf32> to vector<64x256xf32>
    %43 = arith.addf %41, %42 : vector<64x256xf32>
    %cst_20 = arith.constant 0.000000e+00 : f32
    %44 = vector.broadcast %cst_20 : f32 to vector<64x256xf32>
    %45 = arith.maximumf %43, %44 : vector<64x256xf32>
    %46 = vector.broadcast %4 : vector<64x1xf32> to vector<64x256xf32>
    %47 = arith.mulf %45, %46 : vector<64x256xf32>
    %cst_21 = arith.constant dense<0.000000e+00> : vector<256xf32>
    %48 = vector.multi_reduction <add>, %47, %cst_21 [0] : vector<64x256xf32> to vector<256xf32>
    %49 = vector.shape_cast %48 : vector<256xf32> to vector<1x256xf32>
    %50 = vector.broadcast %5 : f32 to vector<1x256xf32>
    %51 = arith.addf %49, %50 : vector<1x256xf32>
    %c0_22 = arith.constant 0 : index
    %52 = arith.index_cast %31 : i32 to index
    %53 = vector.load %arg8[%c0_22, %52] : memref<1x1024xf32, #tpu.memory_space<vmem>>, vector<1x256xf32>
    tpu.vector_store %arg8[%c0_22, %52], %51 {strides = array<i32>} : memref<1x1024xf32, #tpu.memory_space<vmem>>, vector<1x256xf32>,
    %c2_i32 = arith.constant 2 : i32
    %c256_i32_23 = arith.constant 256 : i32
    %54 = arith.muli %c2_i32, %c256_i32_23 : i32
    %55 = tpu.assume_multiple %54, 256 : i32
    %c0_24 = arith.constant 0 : index
    %56 = arith.index_cast %55 : i32 to index
    %57 = vector.load %arg1[%c0_24, %56] : memref<1x1024xf32, #tpu.memory_space<vmem>>, vector<1x256xf32>
    %58 = vector.broadcast %0 : vector<64x1xf32> to vector<64x256xf32>
    %59 = vector.broadcast %57 : vector<1x256xf32> to vector<64x256xf32>
    %60 = arith.mulf %58, %59 : vector<64x256xf32>
    %61 = vector.broadcast %1 : vector<64x1xf32> to vector<64x256xf32>
    %62 = arith.addf %60, %61 : vector<64x256xf32>
    %cst_25 = arith.constant 0.000000e+00 : f32
    %63 = vector.broadcast %cst_25 : f32 to vector<64x256xf32>
    %64 = arith.maximumf %62, %63 : vector<64x256xf32>
    %cst_26 = arith.constant dense<0.000000e+00> : vector<64x256xf32>
    %65 = tpu.matmul %2, %64, %cst_26 {dimension_numbers = #tpu.dot_dimension_numbers<[1], [0], [0], [1], [0, 0, 1, 1], [], []>} : vector<64x64xf32>, vector<64x256xf32>, vector<64x256xf32> -> vector<64x256xf32>
    %66 = vector.broadcast %3 : vector<64x1xf32> to vector<64x256xf32>
    %67 = arith.addf %65, %66 : vector<64x256xf32>
    %cst_27 = arith.constant 0.000000e+00 : f32
    %68 = vector.broadcast %cst_27 : f32 to vector<64x256xf32>
    %69 = arith.maximumf %67, %68 : vector<64x256xf32>
    %70 = vector.broadcast %4 : vector<64x1xf32> to vector<64x256xf32>
    %71 = arith.mulf %69, %70 : vector<64x256xf32>
    %cst_28 = arith.constant dense<0.000000e+00> : vector<256xf32>
    %72 = vector.multi_reduction <add>, %71, %cst_28 [0] : vector<64x256xf32> to vector<256xf32>
    %73 = vector.shape_cast %72 : vector<256xf32> to vector<1x256xf32>
    %74 = vector.broadcast %5 : f32 to vector<1x256xf32>
    %75 = arith.addf %73, %74 : vector<1x256xf32>
    %c0_29 = arith.constant 0 : index
    %76 = arith.index_cast %55 : i32 to index
    %77 = vector.load %arg8[%c0_29, %76] : memref<1x1024xf32, #tpu.memory_space<vmem>>, vector<1x256xf32>
    tpu.vector_store %arg8[%c0_29, %76], %75 {strides = array<i32>} : memref<1x1024xf32, #tpu.memory_space<vmem>>, vector<1x256xf32>,
    %c3_i32 = arith.constant 3 : i32
    %c256_i32_30 = arith.constant 256 : i32
    %78 = arith.muli %c3_i32, %c256_i32_30 : i32
    %79 = tpu.assume_multiple %78, 256 : i32
    %c0_31 = arith.constant 0 : index
    %80 = arith.index_cast %79 : i32 to index
    %81 = vector.load %arg1[%c0_31, %80] : memref<1x1024xf32, #tpu.memory_space<vmem>>, vector<1x256xf32>
    %82 = vector.broadcast %0 : vector<64x1xf32> to vector<64x256xf32>
    %83 = vector.broadcast %81 : vector<1x256xf32> to vector<64x256xf32>
    %84 = arith.mulf %82, %83 : vector<64x256xf32>
    %85 = vector.broadcast %1 : vector<64x1xf32> to vector<64x256xf32>
    %86 = arith.addf %84, %85 : vector<64x256xf32>
    %cst_32 = arith.constant 0.000000e+00 : f32
    %87 = vector.broadcast %cst_32 : f32 to vector<64x256xf32>
    %88 = arith.maximumf %86, %87 : vector<64x256xf32>
    %cst_33 = arith.constant dense<0.000000e+00> : vector<64x256xf32>
    %89 = tpu.matmul %2, %88, %cst_33 {dimension_numbers = #tpu.dot_dimension_numbers<[1], [0], [0], [1], [0, 0, 1, 1], [], []>} : vector<64x64xf32>, vector<64x256xf32>, vector<64x256xf32> -> vector<64x256xf32>
    %90 = vector.broadcast %3 : vector<64x1xf32> to vector<64x256xf32>
    %91 = arith.addf %89, %90 : vector<64x256xf32>
    %cst_34 = arith.constant 0.000000e+00 : f32
    %92 = vector.broadcast %cst_34 : f32 to vector<64x256xf32>
    %93 = arith.maximumf %91, %92 : vector<64x256xf32>
    %94 = vector.broadcast %4 : vector<64x1xf32> to vector<64x256xf32>
    %95 = arith.mulf %93, %94 : vector<64x256xf32>
    %cst_35 = arith.constant dense<0.000000e+00> : vector<256xf32>
    %96 = vector.multi_reduction <add>, %95, %cst_35 [0] : vector<64x256xf32> to vector<256xf32>
    %97 = vector.shape_cast %96 : vector<256xf32> to vector<1x256xf32>
    %98 = vector.broadcast %5 : f32 to vector<1x256xf32>
    %99 = arith.addf %97, %98 : vector<1x256xf32>
    %c0_36 = arith.constant 0 : index
    %100 = arith.index_cast %79 : i32 to index
    %101 = vector.load %arg8[%c0_36, %100] : memref<1x1024xf32, #tpu.memory_space<vmem>>, vector<1x256xf32>
    tpu.vector_store %arg8[%c0_36, %100], %99 {strides = array<i32>} : memref<1x1024xf32, #tpu.memory_space<vmem>>, vector<1x256xf32>,
    %c4_i32 = arith.constant 4 : i32
    return
  }
  func.func @transform_0(%arg0: i32) -> (i32, i32) {
    %c0_i32 = arith.constant 0 : i32
    %c0_i32_0 = arith.constant 0 : i32
    return %c0_i32, %arg0 : i32, i32
  }
  func.func @transform_1(%arg0: i32) -> (i32, i32) {
    %c0_i32 = arith.constant 0 : i32
    %c0_i32_0 = arith.constant 0 : i32
    %c0_i32_1 = arith.constant 0 : i32
    return %c0_i32, %c0_i32_0 : i32, i32
  }
  func.func @transform_2(%arg0: i32) -> (i32, i32) {
    %c0_i32 = arith.constant 0 : i32
    %c0_i32_0 = arith.constant 0 : i32
    %c0_i32_1 = arith.constant 0 : i32
    return %c0_i32, %c0_i32_0 : i32, i32
  }
  func.func @transform_3(%arg0: i32) -> (i32, i32) {
    %c0_i32 = arith.constant 0 : i32
    %c0_i32_0 = arith.constant 0 : i32
    %c0_i32_1 = arith.constant 0 : i32
    return %c0_i32, %c0_i32_0 : i32, i32
  }
  func.func @transform_4(%arg0: i32) -> (i32, i32) {
    %c0_i32 = arith.constant 0 : i32
    %c0_i32_0 = arith.constant 0 : i32
    %c0_i32_1 = arith.constant 0 : i32
    return %c0_i32, %c0_i32_0 : i32, i32
  }
  func.func @transform_5(%arg0: i32) -> (i32, i32) {
    %c0_i32 = arith.constant 0 : i32
    %c0_i32_0 = arith.constant 0 : i32
    %c0_i32_1 = arith.constant 0 : i32
    return %c0_i32, %c0_i32_0 : i32, i32
  }
  func.func @transform_6(%arg0: i32) -> (i32, i32) {
    %c0_i32 = arith.constant 0 : i32
    %c0_i32_0 = arith.constant 0 : i32
    %c0_i32_1 = arith.constant 0 : i32
    return %c0_i32, %c0_i32_0 : i32, i32
  }
  func.func @transform_7(%arg0: i32) -> (i32, i32) {
    %c0_i32 = arith.constant 0 : i32
    %c0_i32_0 = arith.constant 0 : i32
    return %c0_i32, %arg0 : i32, i32
  }
}

</mosaic_0001>

<llo_original>
// kernel: tpu_custom_call.1
$region0: #{tpu_custom_call.1}
  #allocation0 [shape = 'u32[]', space=smem, size = 0x4, offset = 0x4, fixed_abs, tag = 'smem constant byte address 0x4 - core index']
  #allocation1 [shape = 'u32[144,128]{1,0:T(1,128)}', space=vmem, size = 0x12000, scoped, tag = 'internal scratch']
  #allocation2 [shape = 'f32[1,1]{1,0:T(1,128)S(6)}', space=smem, size = 0x200, scoped, tag = 'scoped memory for tpu_custom_call.1']
  %s0 = inlined_call_operand.vmem [shape: f32[1,2048], index: 0, kind: input, shape index: {}]
  %s1 = inlined_call_operand.vmem [shape: f32[64,1], index: 1, kind: input, shape index: {}]
  %s2 = inlined_call_operand.vmem [shape: f32[64,1], index: 2, kind: input, shape index: {}]
  %s3 = inlined_call_operand.vmem [shape: f32[64,64], index: 3, kind: input, shape index: {}]
  %s4 = inlined_call_operand.vmem [shape: f32[64,1], index: 4, kind: input, shape index: {}]
  %s5 = inlined_call_operand.vmem [shape: f32[64,1], index: 5, kind: input, shape index: {}]
  %s6 = inlined_call_operand.<no memory space> [shape: f32[1,1], index: 6, kind: input, shape index: {}]
  %s7 = inlined_call_operand.hbm [shape: f32[1,2048], index: 7, kind: output, shape index: {}]
  %s8 = sld [smem:[#allocation0]]
  $region61: #{tpu_custom_call.1} parent=0
    _
  %s10 = ssub.s32 1, %s8
  %s11 = scalar_select 0, %s10, %s8
  %12 = sst [smem:[#allocation2]] %s6
  $region1: #{tpu_custom_call.1} parent=0
    #allocation3 [shape = 'u8[8192]{0}', space=vmem, size = 0x2000, scoped, tag = 'output window, operand 0']
    #allocation4 [shape = 's32[2]{0}', space=sflag, size = 0x8, scoped, tag = 'scoped memory for tpu_custom_call.1']
    %13 = vsyncpa [#allocation4], 0
    %s14 = scalar_lea.sflag [#allocation4], 1
    %15 = vsyncpa %s14, 0
    loop: start=0, step=1, limit=4
    $region2: #{tpu_custom_call.1} parent=1 // loop_pre_header
      _
    $region3: #{tpu_custom_call.1} parent=1 // loop_header
      %s17 = sphi 0, %s21
      %p18 = scmp.ge.s32.totalorder %s17, 4
      %s27 = sphi 0, %s29
      %s30 = sphi 0, %s27
      %s31 = sphi 0, %s30
      %s47 = sphi 0, %s31
      %s51 = sphi 0, %s51
      %s53 = sphi 0, %s51
      %s54 = sphi 0, %s53
      %s68 = sphi 0, %s54
      %s72 = sphi 0, %s72
      %s74 = sphi 0, %s72
      %s75 = sphi 0, %s74
      %s89 = sphi 0, %s75
      %s93 = sphi 0, %s93
      %s95 = sphi 0, %s93
      %s96 = sphi 0, %s95
      %s110 = sphi 0, %s96
      %s114 = sphi 0, %s114
      %s116 = sphi 0, %s114
      %s117 = sphi 0, %s116
      %s131 = sphi 0, %s117
      %s135 = sphi 0, %s135
      %s137 = sphi 0, %s135
      %s138 = sphi 0, %s137
      %s152 = sphi 0, %s138
      %s156 = sphi 0, %s156
      %s158 = sphi 0, %s156
      %s159 = sphi 0, %s158
      %s173 = sphi 0, %s159
      %s179 = sphi 0, %s181
      %s182 = sphi 0, %s179
      %s183 = sphi 0, %s182
      %s199 = sphi 0, %s183
    $region4: #{tpu_custom_call.1} parent=1 // loop_header_branch
      %20 = sbr.rel (%p18) target = $region8
    $region5: #{tpu_custom_call.1} parent=1 // loop_body
      %s22 = ssub.s32 %s17, 1
      %s23 = ssub.s32 %s17, 2
      %s24 = sadd.s32 %s17, 1
      %s25 = ssub.s32 %s17, %s24
      %p26 = scmp.eq.s32.totalorder %s25, 0
      %s28 = sadd.s32 %s27, 1
      %s29 = scalar_select %p26, %s27, %s28
      %p32 = pneg %p26
      %p33 = scmp.eq.s32.totalorder %s17, 1
      %p34 = por %p32, %p33
      %p35 = scmp.ne.s32.totalorder %s27, %s30
      %p36 = scmp.eq.s32.totalorder %s17, 0
      %p37 = por %p35, %p36
      %p38 = scmp.ne.s32.totalorder %s27, %s30
      %p39 = scmp.eq.s32.totalorder %s22, 1
      %p40 = por %p38, %p39
      %p41 = scmp.ne.s32.totalorder %s30, %s31
      %p42 = scmp.eq.s32.totalorder %s22, 0
      %p43 = por %p41, %p42
      %p44 = scmp.ne.s32.totalorder %s30, %s31
      %p45 = scmp.eq.s32.totalorder %s23, 1
      %p46 = por %p44, %p45
      %p48 = scmp.ne.s32.totalorder %s31, %s47
      %p49 = scmp.eq.s32.totalorder %s23, 0
      %p50 = por %p48, %p49
      %s52 = sadd.s32 %s51, 1
      %p55 = scmp.eq.s32.totalorder %s17, 1
      %p56 = scmp.ne.s32.totalorder %s51, %s53
      %p57 = scmp.eq.s32.totalorder %s17, 0
      %p58 = por %p56, %p57
      %p59 = scmp.ne.s32.totalorder %s51, %s53
      %p60 = scmp.eq.s32.totalorder %s22, 1
      %p61 = por %p59, %p60
      %p62 = scmp.ne.s32.totalorder %s53, %s54
      %p63 = scmp.eq.s32.totalorder %s22, 0
      %p64 = por %p62, %p63
      %p65 = scmp.ne.s32.totalorder %s53, %s54
      %p66 = scmp.eq.s32.totalorder %s23, 1
      %p67 = por %p65, %p66
      %p69 = scmp.ne.s32.totalorder %s54, %s68
      %p70 = scmp.eq.s32.totalorder %s23, 0
      %p71 = por %p69, %p70
      %s73 = sadd.s32 %s72, 1
      %p76 = scmp.eq.s32.totalorder %s17, 1
      %p77 = scmp.ne.s32.totalorder %s72, %s74
      %p78 = scmp.eq.s32.totalorder %s17, 0
      %p79 = por %p77, %p78
      %p80 = scmp.ne.s32.totalorder %s72, %s74
      %p81 = scmp.eq.s32.totalorder %s22, 1
      %p82 = por %p80, %p81
      %p83 = scmp.ne.s32.totalorder %s74, %s75
      %p84 = scmp.eq.s32.totalorder %s22, 0
      %p85 = por %p83, %p84
      %p86 = scmp.ne.s32.totalorder %s74, %s75
      %p87 = scmp.eq.s32.totalorder %s23, 1
      %p88 = por %p86, %p87
      %p90 = scmp.ne.s32.totalorder %s75, %s89
      %p91 = scmp.eq.s32.totalorder %s23, 0
      %p92 = por %p90, %p91
      %s94 = sadd.s32 %s93, 1
      %p97 = scmp.eq.s32.totalorder %s17, 1
      %p98 = scmp.ne.s32.totalorder %s93, %s95
      %p99 = scmp.eq.s32.totalorder %s17, 0
      %p100 = por %p98, %p99
      %p101 = scmp.ne.s32.totalorder %s93, %s95
      %p102 = scmp.eq.s32.totalorder %s22, 1
      %p103 = por %p101, %p102
      %p104 = scmp.ne.s32.totalorder %s95, %s96
      %p105 = scmp.eq.s32.totalorder %s22, 0
      %p106 = por %p104, %p105
      %p107 = scmp.ne.s32.totalorder %s95, %s96
      %p108 = scmp.eq.s32.totalorder %s23, 1
      %p109 = por %p107, %p108
      %p111 = scmp.ne.s32.totalorder %s96, %s110
      %p112 = scmp.eq.s32.totalorder %s23, 0
      %p113 = por %p111, %p112
      %s115 = sadd.s32 %s114, 1
      %p118 = scmp.eq.s32.totalorder %s17, 1
      %p119 = scmp.ne.s32.totalorder %s114, %s116
      %p120 = scmp.eq.s32.totalorder %s17, 0
      %p121 = por %p119, %p120
      %p122 = scmp.ne.s32.totalorder %s114, %s116
      %p123 = scmp.eq.s32.totalorder %s22, 1
      %p124 = por %p122, %p123
      %p125 = scmp.ne.s32.totalorder %s116, %s117
      %p126 = scmp.eq.s32.totalorder %s22, 0
      %p127 = por %p125, %p126
      %p128 = scmp.ne.s32.totalorder %s116, %s117
      %p129 = scmp.eq.s32.totalorder %s23, 1
      %p130 = por %p128, %p129
      %p132 = scmp.ne.s32.totalorder %s117, %s131
      %p133 = scmp.eq.s32.totalorder %s23, 0
      %p134 = por %p132, %p133
      %s136 = sadd.s32 %s135, 1
      %p139 = scmp.eq.s32.totalorder %s17, 1
      %p140 = scmp.ne.s32.totalorder %s135, %s137
      %p141 = scmp.eq.s32.totalorder %s17, 0
      %p142 = por %p140, %p141
      %p143 = scmp.ne.s32.totalorder %s135, %s137
      %p144 = scmp.eq.s32.totalorder %s22, 1
      %p145 = por %p143, %p144
      %p146 = scmp.ne.s32.totalorder %s137, %s138
      %p147 = scmp.eq.s32.totalorder %s22, 0
      %p148 = por %p146, %p147
      %p149 = scmp.ne.s32.totalorder %s137, %s138
      %p150 = scmp.eq.s32.totalorder %s23, 1
      %p151 = por %p149, %p150
      %p153 = scmp.ne.s32.totalorder %s138, %s152
      %p154 = scmp.eq.s32.totalorder %s23, 0
      %p155 = por %p153, %p154
      %s157 = sadd.s32 %s156, 1
      %p160 = scmp.eq.s32.totalorder %s17, 1
      %p161 = scmp.ne.s32.totalorder %s156, %s158
      %p162 = scmp.eq.s32.totalorder %s17, 0
      %p163 = por %p161, %p162
      %p164 = scmp.ne.s32.totalorder %s156, %s158
      %p165 = scmp.eq.s32.totalorder %s22, 1
      %p166 = por %p164, %p165
      %p167 = scmp.ne.s32.totalorder %s158, %s159
      %p168 = scmp.eq.s32.totalorder %s22, 0
      %p169 = por %p167, %p168
      %p170 = scmp.ne.s32.totalorder %s158, %s159
      %p171 = scmp.eq.s32.totalorder %s23, 1
      %p172 = por %p170, %p171
      %p174 = scmp.ne.s32.totalorder %s159, %s173
      %p175 = scmp.eq.s32.totalorder %s23, 0
      %p176 = por %p174, %p175
      %s177 = ssub.s32 %s17, %s24
      %p178 = scmp.eq.s32.totalorder %s177, 0
      %s180 = sadd.s32 %s179, 1
      %s181 = scalar_select %p178, %s179, %s180
      %p184 = pneg %p178
      %p185 = scmp.eq.s32.totalorder %s17, 1
      %p186 = por %p184, %p185
      %p187 = scmp.ne.s32.totalorder %s179, %s182
      %p188 = scmp.eq.s32.totalorder %s17, 0
      %p189 = por %p187, %p188
      %p190 = scmp.ne.s32.totalorder %s179, %s182
      %p191 = scmp.eq.s32.totalorder %s22, 1
      %p192 = por %p190, %p191
      %p193 = scmp.ne.s32.totalorder %s182, %s183
      %p194 = scmp.eq.s32.totalorder %s22, 0
      %p195 = por %p193, %p194
      %p196 = scmp.ne.s32.totalorder %s182, %s183
      %p197 = scmp.eq.s32.totalorder %s23, 1
      %p198 = por %p196, %p197
      %p200 = scmp.ne.s32.totalorder %s183, %s199
      %p201 = scmp.eq.s32.totalorder %s23, 0
      %p202 = por %p200, %p201
      %p203 = scmp.le.s32.totalorder 1, %s17
      %p204 = scmp.lt.s32.totalorder %s17, 3
      %p205 = pnand %p203, %p204
      %p206 = pneg %p205
      // Predicated region
      $region9: #{tpu_custom_call.1} parent=5 // pred_check
        _
      $region10: #{tpu_custom_call.1} parent=5 // pred_check_branch
        %208 = sbr.rel (%p205) target = $region12
      $region11: #{tpu_custom_call.1} parent=5 // pred_region
        %s209 = ssub.s32 %s17, 1
        // Predicated region
        $region13: #{tpu_custom_call.1} parent=11 // pred_check
          %p210 = pneg %p64
        $region14: #{tpu_custom_call.1} parent=11 // pred_check_branch
          %212 = sbr.rel (%p210) target = $region16
        $region15: #{tpu_custom_call.1} parent=11 // pred_region
          _
        $region16: #{tpu_custom_call.1} parent=11 // pred_fallthru
          _
        // Predicated region
        $region17: #{tpu_custom_call.1} parent=11 // pred_check
          %p213 = pneg %p85
        $region18: #{tpu_custom_call.1} parent=11 // pred_check_branch
          %215 = sbr.rel (%p213) target = $region20
        $region19: #{tpu_custom_call.1} parent=11 // pred_region
          _
        $region20: #{tpu_custom_call.1} parent=11 // pred_fallthru
          _
        // Predicated region
        $region21: #{tpu_custom_call.1} parent=11 // pred_check
          %p216 = pneg %p106
        $region22: #{tpu_custom_call.1} parent=11 // pred_check_branch
          %218 = sbr.rel (%p216) target = $region24
        $region23: #{tpu_custom_call.1} parent=11 // pred_region
          _
        $region24: #{tpu_custom_call.1} parent=11 // pred_fallthru
          _
        // Predicated region
        $region25: #{tpu_custom_call.1} parent=11 // pred_check
          %p219 = pneg %p127
        $region26: #{tpu_custom_call.1} parent=11 // pred_check_branch
          %221 = sbr.rel (%p219) target = $region28
        $region27: #{tpu_custom_call.1} parent=11 // pred_region
          _
        $region28: #{tpu_custom_call.1} parent=11 // pred_fallthru
          _
        // Predicated region
        $region29: #{tpu_custom_call.1} parent=11 // pred_check
          %p222 = pneg %p148
        $region30: #{tpu_custom_call.1} parent=11 // pred_check_branch
          %224 = sbr.rel (%p222) target = $region32
        $region31: #{tpu_custom_call.1} parent=11 // pred_region
          _
        $region32: #{tpu_custom_call.1} parent=11 // pred_fallthru
          _
        // Predicated region
        $region33: #{tpu_custom_call.1} parent=11 // pred_check
          %p225 = pneg %p169
        $region34: #{tpu_custom_call.1} parent=11 // pred_check_branch
          %227 = sbr.rel (%p225) target = $region36
        $region35: #{tpu_custom_call.1} parent=11 // pred_region
          _
        $region36: #{tpu_custom_call.1} parent=11 // pred_fallthru
          _
      $region12: #{tpu_custom_call.1} parent=5 // pred_fallthru
        _
      %p228 = scmp.lt.s32.totalorder %s17, 2
      // Predicated region
      $region37: #{tpu_custom_call.1} parent=5 // pred_check
        %p229 = pneg %p228
      $region38: #{tpu_custom_call.1} parent=5 // pred_check_branch
        %231 = sbr.rel (%p229) target = $region40
      $region39: #{tpu_custom_call.1} parent=5 // pred_region
        // Predicated region
        $region41: #{tpu_custom_call.1} parent=39 // pred_check
          %p232 = pneg %p37
        $region42: #{tpu_custom_call.1} parent=39 // pred_check_branch
          %234 = sbr.rel (%p232) target = $region44
        $region43: #{tpu_custom_call.1} parent=39 // pred_region
          %s235 = smul.u32 8, %s17
          %p236 = scmp.lt.s32.totalorder %s235, 15
          %s237 = scalar_select %p236, %s235, 15
          %s238 = scalar_lea.vmem %s0, %s237
          %s239 = smul.u32 8, %s17
        $region44: #{tpu_custom_call.1} parent=39 // pred_fallthru
          _
      $region40: #{tpu_custom_call.1} parent=5 // pred_fallthru
        _
      %p240 = scmp.le.s32.totalorder 1, %s17
      %p241 = scmp.lt.s32.totalorder %s17, 3
      %p242 = pnand %p240, %p241
      %p243 = pneg %p242
      // Predicated region
      $region45: #{tpu_custom_call.1} parent=5 // pred_check
        _
      $region46: #{tpu_custom_call.1} parent=5 // pred_check_branch
        %245 = sbr.rel (%p242) target = $region48
      $region47: #{tpu_custom_call.1} parent=5 // pred_region
        %s246 = ssub.s32 %s17, 1
        %s247 = smul.u32 8, %s22
        %p248 = scmp.lt.s32.totalorder %s247, 15
        %s249 = scalar_select %p248, %s247, 15
        %s250 = scalar_lea.vmem %s0, %s249
        %p251 = pneg %p43
        %p252 = pneg %p40
        %p253 = pneg %p64
        %p254 = pneg %p61
        %p255 = pneg %p85
        %p256 = pneg %p82
        %p257 = pneg %p106
        %p258 = pneg %p103
        %p259 = pneg %p127
        %p260 = pneg %p124
        %p261 = pneg %p148
        %p262 = pneg %p145
        %p263 = pneg %p169
        %p264 = pneg %p166
        %p265 = pneg %p195
        %p266 = pneg %p192
        %s267 = sand.u32 %s182, 1
        %s268 = scalar_lea.sflag [#allocation4], %s267
        %s269 = sand.u32 %s182, 1
        %s270 = smul.addr %s269, 8
        %s271 = scalar_lea.vmem [#allocation3], %s270
        %s272 = smul.u32 8, %s22
        %p273 = scmp.lt.s32.totalorder %s272, 15
        %s274 = scalar_select %p273, %s272, 15
        %s275 = scalar_lea.vmem %s0, %s274
        %s276 = smul.u32 8, %s22
        %s277 = smul.u32 8, %s22
        %v278 = vld [vmem:[%s1] sm:$0xff]
        %v279 = vld [vmem:[%s1 + $0x8] sm:$0xff]
        %v280 = vld [vmem:[%s1 + $0x10] sm:$0xff]
        %v281 = vld [vmem:[%s1 + $0x18] sm:$0xff]
        %v282 = vld [vmem:[%s1 + $0x20] sm:$0xff]
        %v283 = vld [vmem:[%s1 + $0x28] sm:$0xff]
        %v284 = vld [vmem:[%s1 + $0x30] sm:$0xff]
        %v285 = vld [vmem:[%s1 + $0x38] sm:$0xff]
        %v286 = vld [vmem:[%s2] sm:$0xff]
        %v287 = vld [vmem:[%s2 + $0x8] sm:$0xff]
        %v288 = vld [vmem:[%s2 + $0x10] sm:$0xff]
        %v289 = vld [vmem:[%s2 + $0x18] sm:$0xff]
        %v290 = vld [vmem:[%s2 + $0x20] sm:$0xff]
        %v291 = vld [vmem:[%s2 + $0x28] sm:$0xff]
        %v292 = vld [vmem:[%s2 + $0x30] sm:$0xff]
        %v293 = vld [vmem:[%s2 + $0x38] sm:$0xff]
        %v294 = vld [vmem:[%s3] sm:$0xff]
        %v295 = vld [vmem:[%s3 + $0x8] sm:$0xff]
        %v296 = vld [vmem:[%s3 + $0x10] sm:$0xff]
        %v297 = vld [vmem:[%s3 + $0x18] sm:$0xff]
        %v298 = vld [vmem:[%s3 + $0x20] sm:$0xff]
        %v299 = vld [vmem:[%s3 + $0x28] sm:$0xff]
        %v300 = vld [vmem:[%s3 + $0x30] sm:$0xff]
        %v301 = vld [vmem:[%s3 + $0x38] sm:$0xff]
        %v302 = vld [vmem:[%s4] sm:$0xff]
        %v303 = vld [vmem:[%s4 + $0x8] sm:$0xff]
        %v304 = vld [vmem:[%s4 + $0x10] sm:$0xff]
        %v305 = vld [vmem:[%s4 + $0x18] sm:$0xff]
        %v306 = vld [vmem:[%s4 + $0x20] sm:$0xff]
        %v307 = vld [vmem:[%s4 + $0x28] sm:$0xff]
        %v308 = vld [vmem:[%s4 + $0x30] sm:$0xff]
        %v309 = vld [vmem:[%s4 + $0x38] sm:$0xff]
        %v310 = vld [vmem:[%s5] sm:$0xff]
        %v311 = vld [vmem:[%s5 + $0x8] sm:$0xff]
        %v312 = vld [vmem:[%s5 + $0x10] sm:$0xff]
        %v313 = vld [vmem:[%s5 + $0x18] sm:$0xff]
        %v314 = vld [vmem:[%s5 + $0x20] sm:$0xff]
        %v315 = vld [vmem:[%s5 + $0x28] sm:$0xff]
        %v316 = vld [vmem:[%s5 + $0x30] sm:$0xff]
        %v317 = vld [vmem:[%s5 + $0x38] sm:$0xff]
        %s318 = sld [smem:[#allocation2]]
        %v319 = vld [vmem:[%s275] sm:$0x3]
        %321 = vset.pattern.permute.xlu0 0
        %322 = vperm.xlu0 %321, %v278
        %v323 = vpop.permute.xlu0 %322
        %326 = vset.pattern.permute.xlu0 0
        %327 = vperm.xlu0 %326, %v279
        %v328 = vpop.permute.xlu0 %327
        %331 = vset.pattern.permute.xlu0 0
        %332 = vperm.xlu0 %331, %v280
        %v333 = vpop.permute.xlu0 %332
        %336 = vset.pattern.permute.xlu0 0
        %337 = vperm.xlu0 %336, %v281
        %v338 = vpop.permute.xlu0 %337
        %341 = vset.pattern.permute.xlu0 0
        %342 = vperm.xlu0 %341, %v282
        %v343 = vpop.permute.xlu0 %342
        %346 = vset.pattern.permute.xlu0 0
        %347 = vperm.xlu0 %346, %v283
        %v348 = vpop.permute.xlu0 %347
        %351 = vset.pattern.permute.xlu0 0
        %352 = vperm.xlu0 %351, %v284
        %v353 = vpop.permute.xlu0 %352
        %356 = vset.pattern.permute.xlu0 0
        %357 = vperm.xlu0 %356, %v285
        %v358 = vpop.permute.xlu0 %357
        %v361 = vlaneseq
        %v362 = vshrl.u32 %v361, 7
        %v363 = vsub.s32 0, %v362
        %v364 = vrot.slane %v319, %v363
        %v365 = vlaneseq
        %v366 = vshrl.u32 %v365, 7
        %v367 = vsub.s32 1, %v366
        %v368 = vrot.slane %v319, %v367
        %v371 = vmul.f32 %v323, %v364
        %v372 = vmul.f32 %v323, %v368
        %v373 = vmul.f32 %v328, %v364
        %v374 = vmul.f32 %v328, %v368
        %v375 = vmul.f32 %v333, %v364
        %v376 = vmul.f32 %v333, %v368
        %v377 = vmul.f32 %v338, %v364
        %v378 = vmul.f32 %v338, %v368
        %v379 = vmul.f32 %v343, %v364
        %v380 = vmul.f32 %v343, %v368
        %v381 = vmul.f32 %v348, %v364
        %v382 = vmul.f32 %v348, %v368
        %v383 = vmul.f32 %v353, %v364
        %v384 = vmul.f32 %v353, %v368
        %v385 = vmul.f32 %v358, %v364
        %v386 = vmul.f32 %v358, %v368
        %388 = vset.pattern.permute.xlu0 0
        %389 = vperm.xlu0 %388, %v286
        %v390 = vpop.permute.xlu0 %389
        %393 = vset.pattern.permute.xlu0 0
        %394 = vperm.xlu0 %393, %v287
        %v395 = vpop.permute.xlu0 %394
        %398 = vset.pattern.permute.xlu0 0
        %399 = vperm.xlu0 %398, %v288
        %v400 = vpop.permute.xlu0 %399
        %403 = vset.pattern.permute.xlu0 0
        %404 = vperm.xlu0 %403, %v289
        %v405 = vpop.permute.xlu0 %404
        %408 = vset.pattern.permute.xlu0 0
        %409 = vperm.xlu0 %408, %v290
        %v410 = vpop.permute.xlu0 %409
        %413 = vset.pattern.permute.xlu0 0
        %414 = vperm.xlu0 %413, %v291
        %v415 = vpop.permute.xlu0 %414
        %418 = vset.pattern.permute.xlu0 0
        %419 = vperm.xlu0 %418, %v292
        %v420 = vpop.permute.xlu0 %419
        %423 = vset.pattern.permute.xlu0 0
        %424 = vperm.xlu0 %423, %v293
        %v425 = vpop.permute.xlu0 %424
        %v427 = vadd.f32 %v371, %v390
        %v428 = vadd.f32 %v372, %v390
        %v429 = vadd.f32 %v373, %v395
        %v430 = vadd.f32 %v374, %v395
        %v431 = vadd.f32 %v375, %v400
        %v432 = vadd.f32 %v376, %v400
        %v433 = vadd.f32 %v377, %v405
        %v434 = vadd.f32 %v378, %v405
        %v435 = vadd.f32 %v379, %v410
        %v436 = vadd.f32 %v380, %v410
        %v437 = vadd.f32 %v381, %v415
        %v438 = vadd.f32 %v382, %v415
        %v439 = vadd.f32 %v383, %v420
        %v440 = vadd.f32 %v384, %v420
        %v441 = vadd.f32 %v385, %v425
        %v442 = vadd.f32 %v386, %v425
        %v443 = vmax.f32 %v427, 0.0
        %v444 = vmax.f32 %v428, 0.0
        %v445 = vmax.f32 %v429, 0.0
        %v446 = vmax.f32 %v430, 0.0
        %v447 = vmax.f32 %v431, 0.0
        %v448 = vmax.f32 %v432, 0.0
        %v449 = vmax.f32 %v433, 0.0
        %v450 = vmax.f32 %v434, 0.0
        %v451 = vmax.f32 %v435, 0.0
        %v452 = vmax.f32 %v436, 0.0
        %v453 = vmax.f32 %v437, 0.0
        %v454 = vmax.f32 %v438, 0.0
        %v455 = vmax.f32 %v439, 0.0
        %v456 = vmax.f32 %v440, 0.0
        %v457 = vmax.f32 %v441, 0.0
        %v458 = vmax.f32 %v442, 0.0
        %460 = vset.pattern.permute.xlu0 0
        %461 = vperm.xlu0 %460, %v302
        %v462 = vpop.permute.xlu0 %461
        %465 = vset.pattern.permute.xlu0 0
        %466 = vperm.xlu0 %465, %v303
        %v467 = vpop.permute.xlu0 %466
        %470 = vset.pattern.permute.xlu0 0
        %471 = vperm.xlu0 %470, %v304
        %v472 = vpop.permute.xlu0 %471
        %475 = vset.pattern.permute.xlu0 0
        %476 = vperm.xlu0 %475, %v305
        %v477 = vpop.permute.xlu0 %476
        %480 = vset.pattern.permute.xlu0 0
        %481 = vperm.xlu0 %480, %v306
        %v482 = vpop.permute.xlu0 %481
        %485 = vset.pattern.permute.xlu0 0
        %486 = vperm.xlu0 %485, %v307
        %v487 = vpop.permute.xlu0 %486
        %490 = vset.pattern.permute.xlu0 0
        %491 = vperm.xlu0 %490, %v308
        %v492 = vpop.permute.xlu0 %491
        %495 = vset.pattern.permute.xlu0 0
        %496 = vperm.xlu0 %495, %v309
        %v497 = vpop.permute.xlu0 %496
        %vm499 = vcmask 523264
        %v501 = vsel %vm499, %v294, 0
        %v504 = vsel %vm499, %v295, 0
        %v507 = vsel %vm499, %v296, 0
        %v510 = vsel %vm499, %v297, 0
        %v513 = vsel %vm499, %v298, 0
        %v516 = vsel %vm499, %v299, 0
        %v519 = vsel %vm499, %v300, 0
        %v522 = vsel %vm499, %v301, 0
        %524 = vmatprep.subr.mxu0 0.0
        %525 = vmatpush1.msra.mxu0 0.0
        %526 = vmatprep.subr.mxu0 0.0
        %527 = vmatpush1.msra.mxu0 0.0
        %528 = vmatprep.subr.mxu0 0.0
        %529 = vmatpush1.msra.mxu0 0.0
        %530 = vmatprep.subr.mxu0 0.0
        %531 = vmatpush1.msra.mxu0 0.0
        %532 = vmatprep.subr.mxu0 0.0
        %533 = vmatpush1.msra.mxu0 0.0
        %534 = vmatprep.subr.mxu0 0.0
        %535 = vmatpush1.msra.mxu0 0.0
        %536 = vmatprep.subr.mxu0 0.0
        %537 = vmatpush1.msra.mxu0 0.0
        %538 = vmatprep.subr.mxu0 0.0
        %539 = vmatpush1.msra.mxu0 0.0
        %540 = vmatprep.subr.mxu0 %v458
        %541 = vmatpush1.msra.mxu0 %v457
        %542 = vmatprep.subr.mxu0 %v456
        %543 = vmatpush1.msra.mxu0 %v455
        %544 = vmatprep.subr.mxu0 %v454
        %545 = vmatpush1.msra.mxu0 %v453
        %546 = vmatprep.subr.mxu0 %v452
        %547 = vmatpush1.msra.mxu0 %v451
        %548 = vmatprep.subr.mxu0 %v450
        %549 = vmatpush1.msra.mxu0 %v449
        %550 = vmatprep.subr.mxu0 %v448
        %551 = vmatpush1.msra.mxu0 %v447
        %552 = vmatprep.subr.mxu0 %v446
        %553 = vmatpush1.msra.mxu0 %v445
        %554 = vmatprep.subr.mxu0 %v444
        %555 = vmatpush1.msra.mxu0 %v443
        %556 = vmatprep.subr.mxu0 0.0
        %557 = vmatpush2.msra.mxu0 0.0
        %558 = vmatprep.subr.mxu0 0.0
        %559 = vmatpush2.msra.mxu0 0.0
        %560 = vmatprep.subr.mxu0 0.0
        %561 = vmatpush2.msra.mxu0 0.0
        %562 = vmatprep.subr.mxu0 0.0
        %563 = vmatpush2.msra.mxu0 0.0
        %564 = vmatprep.subr.mxu0 0.0
        %565 = vmatpush2.msra.mxu0 0.0
        %566 = vmatprep.subr.mxu0 0.0
        %567 = vmatpush2.msra.mxu0 0.0
        %568 = vmatprep.subr.mxu0 0.0
        %569 = vmatpush2.msra.mxu0 0.0
        %570 = vmatprep.subr.mxu0 0.0
        %571 = vmatpush2.msra.mxu0 0.0
        %572 = vmatprep.subr.mxu0 0.0
        %573 = vmatpush2.msra.mxu0 0.0
        %574 = vmatprep.subr.mxu0 0.0
        %575 = vmatpush2.msra.mxu0 0.0
        %576 = vmatprep.subr.mxu0 0.0
        %577 = vmatpush2.msra.mxu0 0.0
        %578 = vmatprep.subr.mxu0 0.0
        %579 = vmatpush2.msra.mxu0 0.0
        %580 = vmatprep.subr.mxu0 0.0
        %581 = vmatpush2.msra.mxu0 0.0
        %582 = vmatprep.subr.mxu0 0.0
        %583 = vmatpush2.msra.mxu0 0.0
        %584 = vmatprep.subr.mxu0 0.0
        %585 = vmatpush2.msra.mxu0 0.0
        %586 = vmatprep.subr.mxu0 0.0
        %587 = vmatpush2.msra.mxu0 0.0
        %588 = vmatprep.mubr.f32.mxu0 0.0
        %589 = vmatmul.mubr.f32.gmra.mxu0 %v501
        %v590 = vpop.f32.mrf.mxu0
        %v591 = vadd.f32 %v462, %v590
        %v592 = vpop.f32.mrf.mxu0
        %v593 = vadd.f32 %v462, %v592
        %594 = vmatprep.mubr.f32.mxu0 0.0
        %595 = vmatmul.mubr.f32.gmra.mxu0 %v504
        %v596 = vpop.f32.mrf.mxu0
        %v597 = vadd.f32 %v467, %v596
        %v598 = vpop.f32.mrf.mxu0
        %v599 = vadd.f32 %v467, %v598
        %600 = vmatprep.mubr.f32.mxu0 0.0
        %601 = vmatmul.mubr.f32.gmra.mxu0 %v507
        %v602 = vpop.f32.mrf.mxu0
        %v603 = vadd.f32 %v472, %v602
        %v604 = vpop.f32.mrf.mxu0
        %v605 = vadd.f32 %v472, %v604
        %606 = vmatprep.mubr.f32.mxu0 0.0
        %607 = vmatmul.mubr.f32.gmra.mxu0 %v510
        %v608 = vpop.f32.mrf.mxu0
        %v609 = vadd.f32 %v477, %v608
        %v610 = vpop.f32.mrf.mxu0
        %v611 = vadd.f32 %v477, %v610
        %612 = vmatprep.mubr.f32.mxu0 0.0
        %613 = vmatmul.mubr.f32.gmra.mxu0 %v513
        %v614 = vpop.f32.mrf.mxu0
        %v615 = vadd.f32 %v482, %v614
        %v616 = vpop.f32.mrf.mxu0
        %v617 = vadd.f32 %v482, %v616
        %618 = vmatprep.mubr.f32.mxu0 0.0
        %619 = vmatmul.mubr.f32.gmra.mxu0 %v516
        %v620 = vpop.f32.mrf.mxu0
        %v621 = vadd.f32 %v487, %v620
        %v622 = vpop.f32.mrf.mxu0
        %v623 = vadd.f32 %v487, %v622
        %624 = vmatprep.mubr.f32.mxu0 0.0
        %625 = vmatmul.mubr.f32.gmra.mxu0 %v519
        %v626 = vpop.f32.mrf.mxu0
        %v627 = vadd.f32 %v492, %v626
        %v628 = vpop.f32.mrf.mxu0
        %v629 = vadd.f32 %v492, %v628
        %630 = vmatprep.mubr.f32.mxu0 0.0
        %631 = vmatmul.mubr.f32.gmra.mxu0 %v522
        %v632 = vpop.f32.mrf.mxu0
        %v633 = vadd.f32 %v497, %v632
        %v634 = vpop.f32.mrf.mxu0
        %v635 = vadd.f32 %v497, %v634
        %636 = vdwg.mxu0
        %v637 = vmax.f32 %v591, 0.0
        %v638 = vmax.f32 %v593, 0.0
        %v639 = vmax.f32 %v597, 0.0
        %v640 = vmax.f32 %v599, 0.0
        %v641 = vmax.f32 %v603, 0.0
        %v642 = vmax.f32 %v605, 0.0
        %v643 = vmax.f32 %v609, 0.0
        %v644 = vmax.f32 %v611, 0.0
        %v645 = vmax.f32 %v615, 0.0
        %v646 = vmax.f32 %v617, 0.0
        %v647 = vmax.f32 %v621, 0.0
        %v648 = vmax.f32 %v623, 0.0
        %v649 = vmax.f32 %v627, 0.0
        %v650 = vmax.f32 %v629, 0.0
        %v651 = vmax.f32 %v633, 0.0
        %v652 = vmax.f32 %v635, 0.0
        %654 = vset.pattern.permute.xlu0 0
        %655 = vperm.xlu0 %654, %v310
        %v656 = vpop.permute.xlu0 %655
        %659 = vset.pattern.permute.xlu0 0
        %660 = vperm.xlu0 %659, %v311
        %v661 = vpop.permute.xlu0 %660
        %664 = vset.pattern.permute.xlu0 0
        %665 = vperm.xlu0 %664, %v312
        %v666 = vpop.permute.xlu0 %665
        %669 = vset.pattern.permute.xlu0 0
        %670 = vperm.xlu0 %669, %v313
        %v671 = vpop.permute.xlu0 %670
        %674 = vset.pattern.permute.xlu0 0
        %675 = vperm.xlu0 %674, %v314
        %v676 = vpop.permute.xlu0 %675
        %679 = vset.pattern.permute.xlu0 0
        %680 = vperm.xlu0 %679, %v315
        %v681 = vpop.permute.xlu0 %680
        %684 = vset.pattern.permute.xlu0 0
        %685 = vperm.xlu0 %684, %v316
        %v686 = vpop.permute.xlu0 %685
        %689 = vset.pattern.permute.xlu0 0
        %690 = vperm.xlu0 %689, %v317
        %v691 = vpop.permute.xlu0 %690
        %v693 = vmul.f32 %v637, %v656
        %v694 = vmul.f32 %v638, %v656
        %v695 = vmul.f32 %v639, %v661
        %v696 = vmul.f32 %v640, %v661
        %v697 = vmul.f32 %v641, %v666
        %v698 = vmul.f32 %v642, %v666
        %v699 = vmul.f32 %v643, %v671
        %v700 = vmul.f32 %v644, %v671
        %v701 = vmul.f32 %v645, %v676
        %v702 = vmul.f32 %v646, %v676
        %v703 = vmul.f32 %v647, %v681
        %v704 = vmul.f32 %v648, %v681
        %v705 = vmul.f32 %v649, %v686
        %v706 = vmul.f32 %v650, %v686
        %v707 = vmul.f32 %v651, %v691
        %v708 = vmul.f32 %v652, %v691
        %v709 = vadd.f32 %v693, %v695
        %v710 = vadd.f32 %v709, %v697
        %v711 = vadd.f32 %v710, %v699
        %v712 = vadd.f32 %v711, %v701
        %v713 = vadd.f32 %v712, %v703
        %v714 = vadd.f32 %v713, %v705
        %v715 = vadd.f32 %v714, %v707
        %v716 = vrot.slane %v715, 4
        %v717 = vadd.f32 %v715, %v716
        %v718 = vrot.slane %v717, 2
        %v719 = vadd.f32 %v717, %v718
        %v720 = vrot.slane %v719, 1
        %v721 = vadd.f32 %v719, %v720
        %v722 = vadd.f32 %v694, %v696
        %v723 = vadd.f32 %v722, %v698
        %v724 = vadd.f32 %v723, %v700
        %v725 = vadd.f32 %v724, %v702
        %v726 = vadd.f32 %v725, %v704
        %v727 = vadd.f32 %v726, %v706
        %v728 = vadd.f32 %v727, %v708
        %v729 = vrot.slane %v728, 4
        %v730 = vadd.f32 %v728, %v729
        %v731 = vrot.slane %v730, 2
        %v732 = vadd.f32 %v730, %v731
        %v733 = vrot.slane %v732, 1
        %v734 = vadd.f32 %v732, %v733
        %v735 = vstv %s318
        %v736 = vadd.f32 %v721, %v735
        %v737 = vadd.f32 %v734, %v735
        %v740 = vcombine.low %v736, %v737
        %v742 = vunpack.c.l.s4 1966171168
        %v743 = vunpack.c.0.s8 %v742
        %v744 = vlaneseq
        %v745 = vshrl.u32 %v744, 7
        %v746 = vsub.s32 %v743, %v745
        %v747 = vrot.slane %v740, %v746
        %v749 = vunpack.c.l.s4 1966171168
        %v750 = vunpack.c.0.s8 %v749
        %v751 = vlaneseq
        %v752 = vshrl.u32 %v751, 7
        %v753 = vsub.s32 %v750, %v752
        %v754 = vrot.slane %v747, %v753
        %v756 = vlaneseq
        %vm757 = vcmp.ge.s32.totalorder %v756, 0
        %vm758 = vcmp.lt.s32.totalorder %v756, 256
        %vm759 = vmand %vm757, %vm758
        %760 = vst.msk [vmem:[%s271] sm:$0x3] %vm759, %v754
        %s761 = scalar_lea.vmem %s275, 2
        %v762 = vld [vmem:[%s761] sm:$0x3]
        %v764 = vlaneseq
        %v765 = vshrl.u32 %v764, 7
        %v766 = vsub.s32 0, %v765
        %v767 = vrot.slane %v762, %v766
        %v768 = vlaneseq
        %v769 = vshrl.u32 %v768, 7
        %v770 = vsub.s32 1, %v769
        %v771 = vrot.slane %v762, %v770
        %v774 = vmul.f32 %v323, %v767
        %v775 = vmul.f32 %v323, %v771
        %v776 = vmul.f32 %v328, %v767
        %v777 = vmul.f32 %v328, %v771
        %v778 = vmul.f32 %v333, %v767
        %v779 = vmul.f32 %v333, %v771
        %v780 = vmul.f32 %v338, %v767
        %v781 = vmul.f32 %v338, %v771
        %v782 = vmul.f32 %v343, %v767
        %v783 = vmul.f32 %v343, %v771
        %v784 = vmul.f32 %v348, %v767
        %v785 = vmul.f32 %v348, %v771
        %v786 = vmul.f32 %v353, %v767
        %v787 = vmul.f32 %v353, %v771
        %v788 = vmul.f32 %v358, %v767
        %v789 = vmul.f32 %v358, %v771
        %v790 = vadd.f32 %v774, %v390
        %v791 = vadd.f32 %v775, %v390
        %v792 = vadd.f32 %v776, %v395
        %v793 = vadd.f32 %v777, %v395
        %v794 = vadd.f32 %v778, %v400
        %v795 = vadd.f32 %v779, %v400
        %v796 = vadd.f32 %v780, %v405
        %v797 = vadd.f32 %v781, %v405
        %v798 = vadd.f32 %v782, %v410
        %v799 = vadd.f32 %v783, %v410
        %v800 = vadd.f32 %v784, %v415
        %v801 = vadd.f32 %v785, %v415
        %v802 = vadd.f32 %v786, %v420
        %v803 = vadd.f32 %v787, %v420
        %v804 = vadd.f32 %v788, %v425
        %v805 = vadd.f32 %v789, %v425
        %v806 = vmax.f32 %v790, 0.0
        %v807 = vmax.f32 %v791, 0.0
        %v808 = vmax.f32 %v792, 0.0
        %v809 = vmax.f32 %v793, 0.0
        %v810 = vmax.f32 %v794, 0.0
        %v811 = vmax.f32 %v795, 0.0
        %v812 = vmax.f32 %v796, 0.0
        %v813 = vmax.f32 %v797, 0.0
        %v814 = vmax.f32 %v798, 0.0
        %v815 = vmax.f32 %v799, 0.0
        %v816 = vmax.f32 %v800, 0.0
        %v817 = vmax.f32 %v801, 0.0
        %v818 = vmax.f32 %v802, 0.0
        %v819 = vmax.f32 %v803, 0.0
        %v820 = vmax.f32 %v804, 0.0
        %v821 = vmax.f32 %v805, 0.0
        %822 = vmatprep.subr.mxu0 0.0
        %823 = vmatpush1.msra.mxu0 0.0
        %824 = vmatprep.subr.mxu0 0.0
        %825 = vmatpush1.msra.mxu0 0.0
        %826 = vmatprep.subr.mxu0 0.0
        %827 = vmatpush1.msra.mxu0 0.0
        %828 = vmatprep.subr.mxu0 0.0
        %829 = vmatpush1.msra.mxu0 0.0
        %830 = vmatprep.subr.mxu0 0.0
        %831 = vmatpush1.msra.mxu0 0.0
        %832 = vmatprep.subr.mxu0 0.0
        %833 = vmatpush1.msra.mxu0 0.0
        %834 = vmatprep.subr.mxu0 0.0
        %835 = vmatpush1.msra.mxu0 0.0
        %836 = vmatprep.subr.mxu0 0.0
        %837 = vmatpush1.msra.mxu0 0.0
        %838 = vmatprep.subr.mxu0 %v821
        %839 = vmatpush1.msra.mxu0 %v820
        %840 = vmatprep.subr.mxu0 %v819
        %841 = vmatpush1.msra.mxu0 %v818
        %842 = vmatprep.subr.mxu0 %v817
        %843 = vmatpush1.msra.mxu0 %v816
        %844 = vmatprep.subr.mxu0 %v815
        %845 = vmatpush1.msra.mxu0 %v814
        %846 = vmatprep.subr.mxu0 %v813
        %847 = vmatpush1.msra.mxu0 %v812
        %848 = vmatprep.subr.mxu0 %v811
        %849 = vmatpush1.msra.mxu0 %v810
        %850 = vmatprep.subr.mxu0 %v809
        %851 = vmatpush1.msra.mxu0 %v808
        %852 = vmatprep.subr.mxu0 %v807
        %853 = vmatpush1.msra.mxu0 %v806
        %854 = vmatprep.subr.mxu0 0.0
        %855 = vmatpush2.msra.mxu0 0.0
        %856 = vmatprep.subr.mxu0 0.0
        %857 = vmatpush2.msra.mxu0 0.0
        %858 = vmatprep.subr.mxu0 0.0
        %859 = vmatpush2.msra.mxu0 0.0
        %860 = vmatprep.subr.mxu0 0.0
        %861 = vmatpush2.msra.mxu0 0.0
        %862 = vmatprep.subr.mxu0 0.0
        %863 = vmatpush2.msra.mxu0 0.0
        %864 = vmatprep.subr.mxu0 0.0
        %865 = vmatpush2.msra.mxu0 0.0
        %866 = vmatprep.subr.mxu0 0.0
        %867 = vmatpush2.msra.mxu0 0.0
        %868 = vmatprep.subr.mxu0 0.0
        %869 = vmatpush2.msra.mxu0 0.0
        %870 = vmatprep.subr.mxu0 0.0
        %871 = vmatpush2.msra.mxu0 0.0
        %872 = vmatprep.subr.mxu0 0.0
        %873 = vmatpush2.msra.mxu0 0.0
        %874 = vmatprep.subr.mxu0 0.0
        %875 = vmatpush2.msra.mxu0 0.0
        %876 = vmatprep.subr.mxu0 0.0
        %877 = vmatpush2.msra.mxu0 0.0
        %878 = vmatprep.subr.mxu0 0.0
        %879 = vmatpush2.msra.mxu0 0.0
        %880 = vmatprep.subr.mxu0 0.0
        %881 = vmatpush2.msra.mxu0 0.0
        %882 = vmatprep.subr.mxu0 0.0
        %883 = vmatpush2.msra.mxu0 0.0
        %884 = vmatprep.subr.mxu0 0.0
        %885 = vmatpush2.msra.mxu0 0.0
        %886 = vmatprep.mubr.f32.mxu0 0.0
        %887 = vmatmul.mubr.f32.gmra.mxu0 %v501
        %v888 = vpop.f32.mrf.mxu0
        %v889 = vadd.f32 %v462, %v888
        %v890 = vpop.f32.mrf.mxu0
        %v891 = vadd.f32 %v462, %v890
        %892 = vmatprep.mubr.f32.mxu0 0.0
        %893 = vmatmul.mubr.f32.gmra.mxu0 %v504
        %v894 = vpop.f32.mrf.mxu0
        %v895 = vadd.f32 %v467, %v894
        %v896 = vpop.f32.mrf.mxu0
        %v897 = vadd.f32 %v467, %v896
        %898 = vmatprep.mubr.f32.mxu0 0.0
        %899 = vmatmul.mubr.f32.gmra.mxu0 %v507
        %v900 = vpop.f32.mrf.mxu0
        %v901 = vadd.f32 %v472, %v900
        %v902 = vpop.f32.mrf.mxu0
        %v903 = vadd.f32 %v472, %v902
        %904 = vmatprep.mubr.f32.mxu0 0.0
        %905 = vmatmul.mubr.f32.gmra.mxu0 %v510
        %v906 = vpop.f32.mrf.mxu0
        %v907 = vadd.f32 %v477, %v906
        %v908 = vpop.f32.mrf.mxu0
        %v909 = vadd.f32 %v477, %v908
        %910 = vmatprep.mubr.f32.mxu0 0.0
        %911 = vmatmul.mubr.f32.gmra.mxu0 %v513
        %v912 = vpop.f32.mrf.mxu0
        %v913 = vadd.f32 %v482, %v912
        %v914 = vpop.f32.mrf.mxu0
        %v915 = vadd.f32 %v482, %v914
        %916 = vmatprep.mubr.f32.mxu0 0.0
        %917 = vmatmul.mubr.f32.gmra.mxu0 %v516
        %v918 = vpop.f32.mrf.mxu0
        %v919 = vadd.f32 %v487, %v918
        %v920 = vpop.f32.mrf.mxu0
        %v921 = vadd.f32 %v487, %v920
        %922 = vmatprep.mubr.f32.mxu0 0.0
        %923 = vmatmul.mubr.f32.gmra.mxu0 %v519
        %v924 = vpop.f32.mrf.mxu0
        %v925 = vadd.f32 %v492, %v924
        %v926 = vpop.f32.mrf.mxu0
        %v927 = vadd.f32 %v492, %v926
        %928 = vmatprep.mubr.f32.mxu0 0.0
        %929 = vmatmul.mubr.f32.gmra.mxu0 %v522
        %v930 = vpop.f32.mrf.mxu0
        %v931 = vadd.f32 %v497, %v930
        %v932 = vpop.f32.mrf.mxu0
        %v933 = vadd.f32 %v497, %v932
        %934 = vdwg.mxu0
        %v935 = vmax.f32 %v889, 0.0
        %v936 = vmax.f32 %v891, 0.0
        %v937 = vmax.f32 %v895, 0.0
        %v938 = vmax.f32 %v897, 0.0
        %v939 = vmax.f32 %v901, 0.0
        %v940 = vmax.f32 %v903, 0.0
        %v941 = vmax.f32 %v907, 0.0
        %v942 = vmax.f32 %v909, 0.0
        %v943 = vmax.f32 %v913, 0.0
        %v944 = vmax.f32 %v915, 0.0
        %v945 = vmax.f32 %v919, 0.0
        %v946 = vmax.f32 %v921, 0.0
        %v947 = vmax.f32 %v925, 0.0
        %v948 = vmax.f32 %v927, 0.0
        %v949 = vmax.f32 %v931, 0.0
        %v950 = vmax.f32 %v933, 0.0
        %v951 = vmul.f32 %v935, %v656
        %v952 = vmul.f32 %v936, %v656
        %v953 = vmul.f32 %v937, %v661
        %v954 = vmul.f32 %v938, %v661
        %v955 = vmul.f32 %v939, %v666
        %v956 = vmul.f32 %v940, %v666
        %v957 = vmul.f32 %v941, %v671
        %v958 = vmul.f32 %v942, %v671
        %v959 = vmul.f32 %v943, %v676
        %v960 = vmul.f32 %v944, %v676
        %v961 = vmul.f32 %v945, %v681
        %v962 = vmul.f32 %v946, %v681
        %v963 = vmul.f32 %v947, %v686
        %v964 = vmul.f32 %v948, %v686
        %v965 = vmul.f32 %v949, %v691
        %v966 = vmul.f32 %v950, %v691
        %v967 = vadd.f32 %v951, %v953
        %v968 = vadd.f32 %v967, %v955
        %v969 = vadd.f32 %v968, %v957
        %v970 = vadd.f32 %v969, %v959
        %v971 = vadd.f32 %v970, %v961
        %v972 = vadd.f32 %v971, %v963
        %v973 = vadd.f32 %v972, %v965
        %v974 = vrot.slane %v973, 4
        %v975 = vadd.f32 %v973, %v974
        %v976 = vrot.slane %v975, 2
        %v977 = vadd.f32 %v975, %v976
        %v978 = vrot.slane %v977, 1
        %v979 = vadd.f32 %v977, %v978
        %v980 = vadd.f32 %v952, %v954
        %v981 = vadd.f32 %v980, %v956
        %v982 = vadd.f32 %v981, %v958
        %v983 = vadd.f32 %v982, %v960
        %v984 = vadd.f32 %v983, %v962
        %v985 = vadd.f32 %v984, %v964
        %v986 = vadd.f32 %v985, %v966
        %v987 = vrot.slane %v986, 4
        %v988 = vadd.f32 %v986, %v987
        %v989 = vrot.slane %v988, 2
        %v990 = vadd.f32 %v988, %v989
        %v991 = vrot.slane %v990, 1
        %v992 = vadd.f32 %v990, %v991
        %v993 = vadd.f32 %v979, %v735
        %v994 = vadd.f32 %v992, %v735
        %v997 = vcombine.low %v993, %v994
        %v999 = vunpack.c.l.s4 1966171168
        %v1000 = vunpack.c.0.s8 %v999
        %v1001 = vlaneseq
        %v1002 = vshrl.u32 %v1001, 7
        %v1003 = vsub.s32 %v1000, %v1002
        %v1004 = vrot.slane %v997, %v1003
        %v1006 = vunpack.c.l.s4 1966171168
        %v1007 = vunpack.c.0.s8 %v1006
        %v1008 = vlaneseq
        %v1009 = vshrl.u32 %v1008, 7
        %v1010 = vsub.s32 %v1007, %v1009
        %v1011 = vrot.slane %v1004, %v1010
        %s1013 = scalar_lea.vmem %s271, 2 [#allocation3]
        %1014 = vst.msk [vmem:[%s1013] sm:$0x3] %vm759, %v1011
        %s1015 = scalar_lea.vmem %s275, 4
        %v1016 = vld [vmem:[%s1015] sm:$0x3]
        %v1018 = vlaneseq
        %v1019 = vshrl.u32 %v1018, 7
        %v1020 = vsub.s32 0, %v1019
        %v1021 = vrot.slane %v1016, %v1020
        %v1022 = vlaneseq
        %v1023 = vshrl.u32 %v1022, 7
        %v1024 = vsub.s32 1, %v1023
        %v1025 = vrot.slane %v1016, %v1024
        %v1028 = vmul.f32 %v323, %v1021
        %v1029 = vmul.f32 %v323, %v1025
        %v1030 = vmul.f32 %v328, %v1021
        %v1031 = vmul.f32 %v328, %v1025
        %v1032 = vmul.f32 %v333, %v1021
        %v1033 = vmul.f32 %v333, %v1025
        %v1034 = vmul.f32 %v338, %v1021
        %v1035 = vmul.f32 %v338, %v1025
        %v1036 = vmul.f32 %v343, %v1021
        %v1037 = vmul.f32 %v343, %v1025
        %v1038 = vmul.f32 %v348, %v1021
        %v1039 = vmul.f32 %v348, %v1025
        %v1040 = vmul.f32 %v353, %v1021
        %v1041 = vmul.f32 %v353, %v1025
        %v1042 = vmul.f32 %v358, %v1021
        %v1043 = vmul.f32 %v358, %v1025
        %v1044 = vadd.f32 %v1028, %v390
        %v1045 = vadd.f32 %v1029, %v390
        %v1046 = vadd.f32 %v1030, %v395
        %v1047 = vadd.f32 %v1031, %v395
        %v1048 = vadd.f32 %v1032, %v400
        %v1049 = vadd.f32 %v1033, %v400
        %v1050 = vadd.f32 %v1034, %v405
        %v1051 = vadd.f32 %v1035, %v405
        %v1052 = vadd.f32 %v1036, %v410
        %v1053 = vadd.f32 %v1037, %v410
        %v1054 = vadd.f32 %v1038, %v415
        %v1055 = vadd.f32 %v1039, %v415
        %v1056 = vadd.f32 %v1040, %v420
        %v1057 = vadd.f32 %v1041, %v420
        %v1058 = vadd.f32 %v1042, %v425
        %v1059 = vadd.f32 %v1043, %v425
        %v1060 = vmax.f32 %v1044, 0.0
        %v1061 = vmax.f32 %v1045, 0.0
        %v1062 = vmax.f32 %v1046, 0.0
        %v1063 = vmax.f32 %v1047, 0.0
        %v1064 = vmax.f32 %v1048, 0.0
        %v1065 = vmax.f32 %v1049, 0.0
        %v1066 = vmax.f32 %v1050, 0.0
        %v1067 = vmax.f32 %v1051, 0.0
        %v1068 = vmax.f32 %v1052, 0.0
        %v1069 = vmax.f32 %v1053, 0.0
        %v1070 = vmax.f32 %v1054, 0.0
        %v1071 = vmax.f32 %v1055, 0.0
        %v1072 = vmax.f32 %v1056, 0.0
        %v1073 = vmax.f32 %v1057, 0.0
        %v1074 = vmax.f32 %v1058, 0.0
        %v1075 = vmax.f32 %v1059, 0.0
        %1076 = vmatprep.subr.mxu0 0.0
        %1077 = vmatpush1.msra.mxu0 0.0
        %1078 = vmatprep.subr.mxu0 0.0
        %1079 = vmatpush1.msra.mxu0 0.0
        %1080 = vmatprep.subr.mxu0 0.0
        %1081 = vmatpush1.msra.mxu0 0.0
        %1082 = vmatprep.subr.mxu0 0.0
        %1083 = vmatpush1.msra.mxu0 0.0
        %1084 = vmatprep.subr.mxu0 0.0
        %1085 = vmatpush1.msra.mxu0 0.0
        %1086 = vmatprep.subr.mxu0 0.0
        %1087 = vmatpush1.msra.mxu0 0.0
        %1088 = vmatprep.subr.mxu0 0.0
        %1089 = vmatpush1.msra.mxu0 0.0
        %1090 = vmatprep.subr.mxu0 0.0
        %1091 = vmatpush1.msra.mxu0 0.0
        %1092 = vmatprep.subr.mxu0 %v1075
        %1093 = vmatpush1.msra.mxu0 %v1074
        %1094 = vmatprep.subr.mxu0 %v1073
        %1095 = vmatpush1.msra.mxu0 %v1072
        %1096 = vmatprep.subr.mxu0 %v1071
        %1097 = vmatpush1.msra.mxu0 %v1070
        %1098 = vmatprep.subr.mxu0 %v1069
        %1099 = vmatpush1.msra.mxu0 %v1068
        %1100 = vmatprep.subr.mxu0 %v1067
        %1101 = vmatpush1.msra.mxu0 %v1066
        %1102 = vmatprep.subr.mxu0 %v1065
        %1103 = vmatpush1.msra.mxu0 %v1064
        %1104 = vmatprep.subr.mxu0 %v1063
        %1105 = vmatpush1.msra.mxu0 %v1062
        %1106 = vmatprep.subr.mxu0 %v1061
        %1107 = vmatpush1.msra.mxu0 %v1060
        %1108 = vmatprep.subr.mxu0 0.0
        %1109 = vmatpush2.msra.mxu0 0.0
        %1110 = vmatprep.subr.mxu0 0.0
        %1111 = vmatpush2.msra.mxu0 0.0
        %1112 = vmatprep.subr.mxu0 0.0
        %1113 = vmatpush2.msra.mxu0 0.0
        %1114 = vmatprep.subr.mxu0 0.0
        %1115 = vmatpush2.msra.mxu0 0.0
        %1116 = vmatprep.subr.mxu0 0.0
        %1117 = vmatpush2.msra.mxu0 0.0
        %1118 = vmatprep.subr.mxu0 0.0
        %1119 = vmatpush2.msra.mxu0 0.0
        %1120 = vmatprep.subr.mxu0 0.0
        %1121 = vmatpush2.msra.mxu0 0.0
        %1122 = vmatprep.subr.mxu0 0.0
        %1123 = vmatpush2.msra.mxu0 0.0
        %1124 = vmatprep.subr.mxu0 0.0
        %1125 = vmatpush2.msra.mxu0 0.0
        %1126 = vmatprep.subr.mxu0 0.0
        %1127 = vmatpush2.msra.mxu0 0.0
        %1128 = vmatprep.subr.mxu0 0.0
        %1129 = vmatpush2.msra.mxu0 0.0
        %1130 = vmatprep.subr.mxu0 0.0
        %1131 = vmatpush2.msra.mxu0 0.0
        %1132 = vmatprep.subr.mxu0 0.0
        %1133 = vmatpush2.msra.mxu0 0.0
        %1134 = vmatprep.subr.mxu0 0.0
        %1135 = vmatpush2.msra.mxu0 0.0
        %1136 = vmatprep.subr.mxu0 0.0
        %1137 = vmatpush2.msra.mxu0 0.0
        %1138 = vmatprep.subr.mxu0 0.0
        %1139 = vmatpush2.msra.mxu0 0.0
        %1140 = vmatprep.mubr.f32.mxu0 0.0
        %1141 = vmatmul.mubr.f32.gmra.mxu0 %v501
        %v1142 = vpop.f32.mrf.mxu0
        %v1143 = vadd.f32 %v462, %v1142
        %v1144 = vpop.f32.mrf.mxu0
        %v1145 = vadd.f32 %v462, %v1144
        %1146 = vmatprep.mubr.f32.mxu0 0.0
        %1147 = vmatmul.mubr.f32.gmra.mxu0 %v504
        %v1148 = vpop.f32.mrf.mxu0
        %v1149 = vadd.f32 %v467, %v1148
        %v1150 = vpop.f32.mrf.mxu0
        %v1151 = vadd.f32 %v467, %v1150
        %1152 = vmatprep.mubr.f32.mxu0 0.0
        %1153 = vmatmul.mubr.f32.gmra.mxu0 %v507
        %v1154 = vpop.f32.mrf.mxu0
        %v1155 = vadd.f32 %v472, %v1154
        %v1156 = vpop.f32.mrf.mxu0
        %v1157 = vadd.f32 %v472, %v1156
        %1158 = vmatprep.mubr.f32.mxu0 0.0
        %1159 = vmatmul.mubr.f32.gmra.mxu0 %v510
        %v1160 = vpop.f32.mrf.mxu0
        %v1161 = vadd.f32 %v477, %v1160
        %v1162 = vpop.f32.mrf.mxu0
        %v1163 = vadd.f32 %v477, %v1162
        %1164 = vmatprep.mubr.f32.mxu0 0.0
        %1165 = vmatmul.mubr.f32.gmra.mxu0 %v513
        %v1166 = vpop.f32.mrf.mxu0
        %v1167 = vadd.f32 %v482, %v1166
        %v1168 = vpop.f32.mrf.mxu0
        %v1169 = vadd.f32 %v482, %v1168
        %1170 = vmatprep.mubr.f32.mxu0 0.0
        %1171 = vmatmul.mubr.f32.gmra.mxu0 %v516
        %v1172 = vpop.f32.mrf.mxu0
        %v1173 = vadd.f32 %v487, %v1172
        %v1174 = vpop.f32.mrf.mxu0
        %v1175 = vadd.f32 %v487, %v1174
        %1176 = vmatprep.mubr.f32.mxu0 0.0
        %1177 = vmatmul.mubr.f32.gmra.mxu0 %v519
        %v1178 = vpop.f32.mrf.mxu0
        %v1179 = vadd.f32 %v492, %v1178
        %v1180 = vpop.f32.mrf.mxu0
        %v1181 = vadd.f32 %v492, %v1180
        %1182 = vmatprep.mubr.f32.mxu0 0.0
        %1183 = vmatmul.mubr.f32.gmra.mxu0 %v522
        %v1184 = vpop.f32.mrf.mxu0
        %v1185 = vadd.f32 %v497, %v1184
        %v1186 = vpop.f32.mrf.mxu0
        %v1187 = vadd.f32 %v497, %v1186
        %1188 = vdwg.mxu0
        %v1189 = vmax.f32 %v1143, 0.0
        %v1190 = vmax.f32 %v1145, 0.0
        %v1191 = vmax.f32 %v1149, 0.0
        %v1192 = vmax.f32 %v1151, 0.0
        %v1193 = vmax.f32 %v1155, 0.0
        %v1194 = vmax.f32 %v1157, 0.0
        %v1195 = vmax.f32 %v1161, 0.0
        %v1196 = vmax.f32 %v1163, 0.0
        %v1197 = vmax.f32 %v1167, 0.0
        %v1198 = vmax.f32 %v1169, 0.0
        %v1199 = vmax.f32 %v1173, 0.0
        %v1200 = vmax.f32 %v1175, 0.0
        %v1201 = vmax.f32 %v1179, 0.0
        %v1202 = vmax.f32 %v1181, 0.0
        %v1203 = vmax.f32 %v1185, 0.0
        %v1204 = vmax.f32 %v1187, 0.0
        %v1205 = vmul.f32 %v1189, %v656
        %v1206 = vmul.f32 %v1190, %v656
        %v1207 = vmul.f32 %v1191, %v661
        %v1208 = vmul.f32 %v1192, %v661
        %v1209 = vmul.f32 %v1193, %v666
        %v1210 = vmul.f32 %v1194, %v666
        %v1211 = vmul.f32 %v1195, %v671
        %v1212 = vmul.f32 %v1196, %v671
        %v1213 = vmul.f32 %v1197, %v676
        %v1214 = vmul.f32 %v1198, %v676
        %v1215 = vmul.f32 %v1199, %v681
        %v1216 = vmul.f32 %v1200, %v681
        %v1217 = vmul.f32 %v1201, %v686
        %v1218 = vmul.f32 %v1202, %v686
        %v1219 = vmul.f32 %v1203, %v691
        %v1220 = vmul.f32 %v1204, %v691
        %v1221 = vadd.f32 %v1205, %v1207
        %v1222 = vadd.f32 %v1221, %v1209
        %v1223 = vadd.f32 %v1222, %v1211
        %v1224 = vadd.f32 %v1223, %v1213
        %v1225 = vadd.f32 %v1224, %v1215
        %v1226 = vadd.f32 %v1225, %v1217
        %v1227 = vadd.f32 %v1226, %v1219
        %v1228 = vrot.slane %v1227, 4
        %v1229 = vadd.f32 %v1227, %v1228
        %v1230 = vrot.slane %v1229, 2
        %v1231 = vadd.f32 %v1229, %v1230
        %v1232 = vrot.slane %v1231, 1
        %v1233 = vadd.f32 %v1231, %v1232
        %v1234 = vadd.f32 %v1206, %v1208
        %v1235 = vadd.f32 %v1234, %v1210
        %v1236 = vadd.f32 %v1235, %v1212
        %v1237 = vadd.f32 %v1236, %v1214
        %v1238 = vadd.f32 %v1237, %v1216
        %v1239 = vadd.f32 %v1238, %v1218
        %v1240 = vadd.f32 %v1239, %v1220
        %v1241 = vrot.slane %v1240, 4
        %v1242 = vadd.f32 %v1240, %v1241
        %v1243 = vrot.slane %v1242, 2
        %v1244 = vadd.f32 %v1242, %v1243
        %v1245 = vrot.slane %v1244, 1
        %v1246 = vadd.f32 %v1244, %v1245
        %v1247 = vadd.f32 %v1233, %v735
        %v1248 = vadd.f32 %v1246, %v735
        %v1251 = vcombine.low %v1247, %v1248
        %v1253 = vunpack.c.l.s4 1966171168
        %v1254 = vunpack.c.0.s8 %v1253
        %v1255 = vlaneseq
        %v1256 = vshrl.u32 %v1255, 7
        %v1257 = vsub.s32 %v1254, %v1256
        %v1258 = vrot.slane %v1251, %v1257
        %v1260 = vunpack.c.l.s4 1966171168
        %v1261 = vunpack.c.0.s8 %v1260
        %v1262 = vlaneseq
        %v1263 = vshrl.u32 %v1262, 7
        %v1264 = vsub.s32 %v1261, %v1263
        %v1265 = vrot.slane %v1258, %v1264
        %s1267 = scalar_lea.vmem %s271, 4 [#allocation3]
        %1268 = vst.msk [vmem:[%s1267] sm:$0x3] %vm759, %v1265
        %s1269 = scalar_lea.vmem %s275, 6
        %v1270 = vld [vmem:[%s1269] sm:$0x3]
        %v1272 = vlaneseq
        %v1273 = vshrl.u32 %v1272, 7
        %v1274 = vsub.s32 0, %v1273
        %v1275 = vrot.slane %v1270, %v1274
        %v1276 = vlaneseq
        %v1277 = vshrl.u32 %v1276, 7
        %v1278 = vsub.s32 1, %v1277
        %v1279 = vrot.slane %v1270, %v1278
        %v1282 = vmul.f32 %v323, %v1275
        %v1283 = vmul.f32 %v323, %v1279
        %v1284 = vmul.f32 %v328, %v1275
        %v1285 = vmul.f32 %v328, %v1279
        %v1286 = vmul.f32 %v333, %v1275
        %v1287 = vmul.f32 %v333, %v1279
        %v1288 = vmul.f32 %v338, %v1275
        %v1289 = vmul.f32 %v338, %v1279
        %v1290 = vmul.f32 %v343, %v1275
        %v1291 = vmul.f32 %v343, %v1279
        %v1292 = vmul.f32 %v348, %v1275
        %v1293 = vmul.f32 %v348, %v1279
        %v1294 = vmul.f32 %v353, %v1275
        %v1295 = vmul.f32 %v353, %v1279
        %v1296 = vmul.f32 %v358, %v1275
        %v1297 = vmul.f32 %v358, %v1279
        %v1298 = vadd.f32 %v1282, %v390
        %v1299 = vadd.f32 %v1283, %v390
        %v1300 = vadd.f32 %v1284, %v395
        %v1301 = vadd.f32 %v1285, %v395
        %v1302 = vadd.f32 %v1286, %v400
        %v1303 = vadd.f32 %v1287, %v400
        %v1304 = vadd.f32 %v1288, %v405
        %v1305 = vadd.f32 %v1289, %v405
        %v1306 = vadd.f32 %v1290, %v410
        %v1307 = vadd.f32 %v1291, %v410
        %v1308 = vadd.f32 %v1292, %v415
        %v1309 = vadd.f32 %v1293, %v415
        %v1310 = vadd.f32 %v1294, %v420
        %v1311 = vadd.f32 %v1295, %v420
        %v1312 = vadd.f32 %v1296, %v425
        %v1313 = vadd.f32 %v1297, %v425
        %v1314 = vmax.f32 %v1298, 0.0
        %v1315 = vmax.f32 %v1299, 0.0
        %v1316 = vmax.f32 %v1300, 0.0
        %v1317 = vmax.f32 %v1301, 0.0
        %v1318 = vmax.f32 %v1302, 0.0
        %v1319 = vmax.f32 %v1303, 0.0
        %v1320 = vmax.f32 %v1304, 0.0
        %v1321 = vmax.f32 %v1305, 0.0
        %v1322 = vmax.f32 %v1306, 0.0
        %v1323 = vmax.f32 %v1307, 0.0
        %v1324 = vmax.f32 %v1308, 0.0
        %v1325 = vmax.f32 %v1309, 0.0
        %v1326 = vmax.f32 %v1310, 0.0
        %v1327 = vmax.f32 %v1311, 0.0
        %v1328 = vmax.f32 %v1312, 0.0
        %v1329 = vmax.f32 %v1313, 0.0
        %1330 = vmatprep.subr.mxu0 0.0
        %1331 = vmatpush1.msra.mxu0 0.0
        %1332 = vmatprep.subr.mxu0 0.0
        %1333 = vmatpush1.msra.mxu0 0.0
        %1334 = vmatprep.subr.mxu0 0.0
        %1335 = vmatpush1.msra.mxu0 0.0
        %1336 = vmatprep.subr.mxu0 0.0
        %1337 = vmatpush1.msra.mxu0 0.0
        %1338 = vmatprep.subr.mxu0 0.0
        %1339 = vmatpush1.msra.mxu0 0.0
        %1340 = vmatprep.subr.mxu0 0.0
        %1341 = vmatpush1.msra.mxu0 0.0
        %1342 = vmatprep.subr.mxu0 0.0
        %1343 = vmatpush1.msra.mxu0 0.0
        %1344 = vmatprep.subr.mxu0 0.0
        %1345 = vmatpush1.msra.mxu0 0.0
        %1346 = vmatprep.subr.mxu0 %v1329
        %1347 = vmatpush1.msra.mxu0 %v1328
        %1348 = vmatprep.subr.mxu0 %v1327
        %1349 = vmatpush1.msra.mxu0 %v1326
        %1350 = vmatprep.subr.mxu0 %v1325
        %1351 = vmatpush1.msra.mxu0 %v1324
        %1352 = vmatprep.subr.mxu0 %v1323
        %1353 = vmatpush1.msra.mxu0 %v1322
        %1354 = vmatprep.subr.mxu0 %v1321
        %1355 = vmatpush1.msra.mxu0 %v1320
        %1356 = vmatprep.subr.mxu0 %v1319
        %1357 = vmatpush1.msra.mxu0 %v1318
        %1358 = vmatprep.subr.mxu0 %v1317
        %1359 = vmatpush1.msra.mxu0 %v1316
        %1360 = vmatprep.subr.mxu0 %v1315
        %1361 = vmatpush1.msra.mxu0 %v1314
        %1362 = vmatprep.subr.mxu0 0.0
        %1363 = vmatpush2.msra.mxu0 0.0
        %1364 = vmatprep.subr.mxu0 0.0
        %1365 = vmatpush2.msra.mxu0 0.0
        %1366 = vmatprep.subr.mxu0 0.0
        %1367 = vmatpush2.msra.mxu0 0.0
        %1368 = vmatprep.subr.mxu0 0.0
        %1369 = vmatpush2.msra.mxu0 0.0
        %1370 = vmatprep.subr.mxu0 0.0
        %1371 = vmatpush2.msra.mxu0 0.0
        %1372 = vmatprep.subr.mxu0 0.0
        %1373 = vmatpush2.msra.mxu0 0.0
        %1374 = vmatprep.subr.mxu0 0.0
        %1375 = vmatpush2.msra.mxu0 0.0
        %1376 = vmatprep.subr.mxu0 0.0
        %1377 = vmatpush2.msra.mxu0 0.0
        %1378 = vmatprep.subr.mxu0 0.0
        %1379 = vmatpush2.msra.mxu0 0.0
        %1380 = vmatprep.subr.mxu0 0.0
        %1381 = vmatpush2.msra.mxu0 0.0
        %1382 = vmatprep.subr.mxu0 0.0
        %1383 = vmatpush2.msra.mxu0 0.0
        %1384 = vmatprep.subr.mxu0 0.0
        %1385 = vmatpush2.msra.mxu0 0.0
        %1386 = vmatprep.subr.mxu0 0.0
        %1387 = vmatpush2.msra.mxu0 0.0
        %1388 = vmatprep.subr.mxu0 0.0
        %1389 = vmatpush2.msra.mxu0 0.0
        %1390 = vmatprep.subr.mxu0 0.0
        %1391 = vmatpush2.msra.mxu0 0.0
        %1392 = vmatprep.subr.mxu0 0.0
        %1393 = vmatpush2.msra.mxu0 0.0
        %1394 = vmatprep.mubr.f32.mxu0 0.0
        %1395 = vmatmul.mubr.f32.gmra.mxu0 %v501
        %v1396 = vpop.f32.mrf.mxu0
        %v1397 = vadd.f32 %v462, %v1396
        %v1398 = vpop.f32.mrf.mxu0
        %v1399 = vadd.f32 %v462, %v1398
        %1400 = vmatprep.mubr.f32.mxu0 0.0
        %1401 = vmatmul.mubr.f32.gmra.mxu0 %v504
        %v1402 = vpop.f32.mrf.mxu0
        %v1403 = vadd.f32 %v467, %v1402
        %v1404 = vpop.f32.mrf.mxu0
        %v1405 = vadd.f32 %v467, %v1404
        %1406 = vmatprep.mubr.f32.mxu0 0.0
        %1407 = vmatmul.mubr.f32.gmra.mxu0 %v507
        %v1408 = vpop.f32.mrf.mxu0
        %v1409 = vadd.f32 %v472, %v1408
        %v1410 = vpop.f32.mrf.mxu0
        %v1411 = vadd.f32 %v472, %v1410
        %1412 = vmatprep.mubr.f32.mxu0 0.0
        %1413 = vmatmul.mubr.f32.gmra.mxu0 %v510
        %v1414 = vpop.f32.mrf.mxu0
        %v1415 = vadd.f32 %v477, %v1414
        %v1416 = vpop.f32.mrf.mxu0
        %v1417 = vadd.f32 %v477, %v1416
        %1418 = vmatprep.mubr.f32.mxu0 0.0
        %1419 = vmatmul.mubr.f32.gmra.mxu0 %v513
        %v1420 = vpop.f32.mrf.mxu0
        %v1421 = vadd.f32 %v482, %v1420
        %v1422 = vpop.f32.mrf.mxu0
        %v1423 = vadd.f32 %v482, %v1422
        %1424 = vmatprep.mubr.f32.mxu0 0.0
        %1425 = vmatmul.mubr.f32.gmra.mxu0 %v516
        %v1426 = vpop.f32.mrf.mxu0
        %v1427 = vadd.f32 %v487, %v1426
        %v1428 = vpop.f32.mrf.mxu0
        %v1429 = vadd.f32 %v487, %v1428
        %1430 = vmatprep.mubr.f32.mxu0 0.0
        %1431 = vmatmul.mubr.f32.gmra.mxu0 %v519
        %v1432 = vpop.f32.mrf.mxu0
        %v1433 = vadd.f32 %v492, %v1432
        %v1434 = vpop.f32.mrf.mxu0
        %v1435 = vadd.f32 %v492, %v1434
        %1436 = vmatprep.mubr.f32.mxu0 0.0
        %1437 = vmatmul.mubr.f32.gmra.mxu0 %v522
        %v1438 = vpop.f32.mrf.mxu0
        %v1439 = vadd.f32 %v497, %v1438
        %v1440 = vpop.f32.mrf.mxu0
        %v1441 = vadd.f32 %v497, %v1440
        %1442 = vdwg.mxu0
        %v1443 = vmax.f32 %v1397, 0.0
        %v1444 = vmax.f32 %v1399, 0.0
        %v1445 = vmax.f32 %v1403, 0.0
        %v1446 = vmax.f32 %v1405, 0.0
        %v1447 = vmax.f32 %v1409, 0.0
        %v1448 = vmax.f32 %v1411, 0.0
        %v1449 = vmax.f32 %v1415, 0.0
        %v1450 = vmax.f32 %v1417, 0.0
        %v1451 = vmax.f32 %v1421, 0.0
        %v1452 = vmax.f32 %v1423, 0.0
        %v1453 = vmax.f32 %v1427, 0.0
        %v1454 = vmax.f32 %v1429, 0.0
        %v1455 = vmax.f32 %v1433, 0.0
        %v1456 = vmax.f32 %v1435, 0.0
        %v1457 = vmax.f32 %v1439, 0.0
        %v1458 = vmax.f32 %v1441, 0.0
        %v1459 = vmul.f32 %v1443, %v656
        %v1460 = vmul.f32 %v1444, %v656
        %v1461 = vmul.f32 %v1445, %v661
        %v1462 = vmul.f32 %v1446, %v661
        %v1463 = vmul.f32 %v1447, %v666
        %v1464 = vmul.f32 %v1448, %v666
        %v1465 = vmul.f32 %v1449, %v671
        %v1466 = vmul.f32 %v1450, %v671
        %v1467 = vmul.f32 %v1451, %v676
        %v1468 = vmul.f32 %v1452, %v676
        %v1469 = vmul.f32 %v1453, %v681
        %v1470 = vmul.f32 %v1454, %v681
        %v1471 = vmul.f32 %v1455, %v686
        %v1472 = vmul.f32 %v1456, %v686
        %v1473 = vmul.f32 %v1457, %v691
        %v1474 = vmul.f32 %v1458, %v691
        %v1475 = vadd.f32 %v1459, %v1461
        %v1476 = vadd.f32 %v1475, %v1463
        %v1477 = vadd.f32 %v1476, %v1465
        %v1478 = vadd.f32 %v1477, %v1467
        %v1479 = vadd.f32 %v1478, %v1469
        %v1480 = vadd.f32 %v1479, %v1471
        %v1481 = vadd.f32 %v1480, %v1473
        %v1482 = vrot.slane %v1481, 4
        %v1483 = vadd.f32 %v1481, %v1482
        %v1484 = vrot.slane %v1483, 2
        %v1485 = vadd.f32 %v1483, %v1484
        %v1486 = vrot.slane %v1485, 1
        %v1487 = vadd.f32 %v1485, %v1486
        %v1488 = vadd.f32 %v1460, %v1462
        %v1489 = vadd.f32 %v1488, %v1464
        %v1490 = vadd.f32 %v1489, %v1466
        %v1491 = vadd.f32 %v1490, %v1468
        %v1492 = vadd.f32 %v1491, %v1470
        %v1493 = vadd.f32 %v1492, %v1472
        %v1494 = vadd.f32 %v1493, %v1474
        %v1495 = vrot.slane %v1494, 4
        %v1496 = vadd.f32 %v1494, %v1495
        %v1497 = vrot.slane %v1496, 2
        %v1498 = vadd.f32 %v1496, %v1497
        %v1499 = vrot.slane %v1498, 1
        %v1500 = vadd.f32 %v1498, %v1499
        %v1501 = vadd.f32 %v1487, %v735
        %v1502 = vadd.f32 %v1500, %v735
        %v1505 = vcombine.low %v1501, %v1502
        %v1507 = vunpack.c.l.s4 1966171168
        %v1508 = vunpack.c.0.s8 %v1507
        %v1509 = vlaneseq
        %v1510 = vshrl.u32 %v1509, 7
        %v1511 = vsub.s32 %v1508, %v1510
        %v1512 = vrot.slane %v1505, %v1511
        %v1514 = vunpack.c.l.s4 1966171168
        %v1515 = vunpack.c.0.s8 %v1514
        %v1516 = vlaneseq
        %v1517 = vshrl.u32 %v1516, 7
        %v1518 = vsub.s32 %v1515, %v1517
        %v1519 = vrot.slane %v1512, %v1518
        %s1521 = scalar_lea.vmem %s271, 6 [#allocation3]
        %1522 = vst.msk [vmem:[%s1521] sm:$0x3] %vm759, %v1519
        %s1523 = sand.u32 %s182, 1
        %s1524 = scalar_lea.sflag [#allocation4], %s1523
        %s1525 = sand.u32 %s182, 1
        %s1526 = smul.addr %s1525, 8
        %s1527 = scalar_lea.vmem [#allocation3], %s1526
        // Predicated region
        $region49: #{tpu_custom_call.1} parent=47 // pred_check
          %p1528 = pneg %p192
        $region50: #{tpu_custom_call.1} parent=47 // pred_check_branch
          %1530 = sbr.rel (%p1528) target = $region52
        $region51: #{tpu_custom_call.1} parent=47 // pred_region
          %s1531 = smul.u32 8, %s22
          %s1533 = ssub.s32 128, 128
          %1534 = vsyncadd %s1524, %s1533
          %s1535 = smul.addr %s1531, 16
          %s1536 = scalar_lea.hbm %s7, %s1535
          %s1538 = sshll.u32 %s1527, 4
          %s1539 = int_to_ptr.vmem [resolvable:$true] %s1538
          %1541 = dma.vmem_to_hbm [thread:$0]  %s1539, 128, %s1536, %s1524
        $region52: #{tpu_custom_call.1} parent=47 // pred_fallthru
          _
      $region48: #{tpu_custom_call.1} parent=5 // pred_fallthru
        _
      %p1542 = scmp.le.s32.totalorder 2, %s17
      // Predicated region
      $region53: #{tpu_custom_call.1} parent=5 // pred_check
        %p1543 = pneg %p1542
      $region54: #{tpu_custom_call.1} parent=5 // pred_check_branch
        %1545 = sbr.rel (%p1543) target = $region56
      $region55: #{tpu_custom_call.1} parent=5 // pred_region
        %s1546 = ssub.s32 %s17, 2
        // Predicated region
        $region57: #{tpu_custom_call.1} parent=55 // pred_check
          %p1547 = pneg %p198
        $region58: #{tpu_custom_call.1} parent=55 // pred_check_branch
          %1549 = sbr.rel (%p1547) target = $region60
        $region59: #{tpu_custom_call.1} parent=55 // pred_region
          %s1550 = sand.u32 %s183, 1
          %s1551 = scalar_lea.sflag [#allocation4], %s1550
          %s1552 = sand.u32 %s183, 1
          %s1553 = smul.addr %s1552, 8
          %s1554 = scalar_lea.vmem [#allocation3], %s1553
          %1555 = dma.done %s1551, 128
        $region60: #{tpu_custom_call.1} parent=55 // pred_fallthru
          _
      $region56: #{tpu_custom_call.1} parent=5 // pred_fallthru
        _
    $region6: #{tpu_custom_call.1} parent=1 // loop_footer
      %s21 = sadd.s32 1, %s17
    $region7: #{tpu_custom_call.1} parent=1 // loop_footer_branch
      %16 = sbr.rel target = $region3
    $region8: #{tpu_custom_call.1} parent=1 // loop_exit
      _
    %1556 = vsyncpa [#allocation4], 1
    %s1557 = scalar_lea.sflag [#allocation4], 1
    %1558 = vsyncpa %s1557, 1

</llo_original>
